<compile_context>
chip_gen: v5e
topology: v5e:2x2
jax: 0.10.0
libtpu: 0.0.40
codegen_flags: <defaults>
</compile_context>

<pallas_src>
import functools
import math

import jax
import jax.numpy as jnp
from jax import lax
from jax.experimental import pallas as pl
from jax.experimental.pallas import tpu as pltpu


def _up_conv_2x2_kernel(xu_ref, skip_ref, w_ref, b_ref, out_ref, *,
                        c_skip, c_out, w2, p_h0, p_w0, col_lo, col_hi,
                        hs, th, guard_rows, zero_fill):
    """One (batch, row-tile) grid step.

    xu_ref:   (1, th, C_in, 2W)            column-duplicated input rows
    skip_ref: (1, c_skip, th_out, Ws)      skip rows for this output block
    w_ref:    (2, 2, c_out, C_in)          w[ki, kj, co, ci] = weight[ci, co, ki, kj]
    b_ref:    (c_out, 1)                   f32 bias
    out_ref:  (1, c_skip + c_out, th_out, Ws)   final NCHW output block
    """
    # ---- concat half: copy the skip feature map straight through ----
    out_ref[0, 0:c_skip, :, :] = skip_ref[0].astype(out_ref.dtype)

    th_out = out_ref.shape[2]
    ws = out_ref.shape[3]

    # ---- zero-fill the conv channels only when F.pad actually pads ----
    if zero_fill:
        out_ref[0, c_skip:c_skip + c_out, :, :] = jnp.zeros(
            (c_out, th_out, ws), out_ref.dtype)

    # ---- loop invariants, hoisted (JAX does not CSE broadcasts inside loops) ----
    w00 = w_ref[0, 0]
    w01 = w_ref[0, 1]
    w10 = w_ref[1, 0]
    w11 = w_ref[1, 1]
    col_even = (lax.broadcasted_iota(jnp.int32, (c_out, w2), 1) & 1) == 0
    bias_row = jnp.broadcast_to(b_ref[...], (c_out, w2)).astype(jnp.float32)

    dst_lo = p_w0 + col_lo
    dst_hi = p_w0 + col_hi

    def do_row(t):
        xr = xu_ref[0, t]                                    # (C_in, 2W)
        # 4 kernel taps -> two dense (c_out, 2W) output rows (one per row parity).
        y00 = jnp.dot(w00, xr, preferred_element_type=jnp.float32)
        y01 = jnp.dot(w01, xr, preferred_element_type=jnp.float32)
        y10 = jnp.dot(w10, xr, preferred_element_type=jnp.float32)
        y11 = jnp.dot(w11, xr, preferred_element_type=jnp.float32)
        row0 = (jnp.where(col_even, y00, y01) + bias_row).astype(out_ref.dtype)
        row1 = (jnp.where(col_even, y10, y11) + bias_row).astype(out_ref.dtype)
        if col_lo > 0 or col_hi < w2:                        # column crop (dW < 0) only
            row0 = row0[:, col_lo:col_hi]
            row1 = row1[:, col_lo:col_hi]
        r0 = 2 * t + p_h0
        r1 = r0 + 1

        def store(r, row):
            if not guard_rows:
                out_ref[0, c_skip:c_skip + c_out, r, dst_lo:dst_hi] = row
            elif isinstance(r, int):                          # static row index
                if 0 <= r < hs:
                    out_ref[0, c_skip:c_skip + c_out, r, dst_lo:dst_hi] = row
            else:                                             # row crop (dH < 0) only
                @pl.when(jnp.logical_and(r >= 0, r < hs))
                def _():
                    out_ref[0, c_skip:c_skip + c_out, r, dst_lo:dst_hi] = row

        store(r0, row0)
        store(r1, row1)

    if th <= 16:
        for t in range(th):           # short fixed trip-count: fully unrolled, static indices
            do_row(t)
    else:
        def body(t, carry):
            do_row(t)
            return carry
        lax.fori_loop(0, th, body, 0)


def _pick_row_tile(h, hs, d_h, per_outrow_bytes):
    """Largest input-row tile whose blocks stay ~3 MiB and keep the out row-block 8-aligned."""
    if d_h != 0 or h <= 0:
        return max(h, 1)              # pad/crop case: one block covers all rows
    budget_rows = max(8, (3 * 2 ** 20) // max(1, per_outrow_bytes))
    cands = [t for t in range(1, h + 1)
             if h % t == 0 and ((2 * t) % 8 == 0 or 2 * t == hs)]
    good = [t for t in cands if 2 * t <= budget_rows]
    return max(good) if good else min(cands)


def up_conv_2x2(x, skip, weight, bias, *, compute_dtype=None):
    """Forward pass of upConv_2x2 (NCHW, PyTorch ConvTranspose2d weight layout).

    x:      (B, C_in, H, W)
    skip:   (B, C_skip, Hs, Ws)
    weight: (C_in, C_out, 2, 2)
    bias:   (C_out,)
    returns (B, C_skip + C_out, Hs, Ws)
    """
    b_n, c_in, h, w = x.shape
    c_out = weight.shape[1]
    c_skip = skip.shape[1]
    hs, ws = skip.shape[2], skip.shape[3]
    c_total = c_skip + c_out

    d_h, d_w = hs - 2 * h, ws - 2 * w
    p_h0, p_w0 = d_h // 2, d_w // 2
    w2 = 2 * w
    col_lo, col_hi = max(0, -p_w0), min(w2, ws - p_w0)   # un-cropped range of duplicated cols

    out_dtype = jnp.promote_types(x.dtype, skip.dtype)
    cdtype = jnp.dtype(compute_dtype) if compute_dtype is not None else jnp.dtype(x.dtype)

    # Column-duplicated input with rows leading: (B, H, C_in, 2W).  Single cheap XLA copy of
    # the smallest tensor; lets the kernel emit dense lane-contiguous output rows.
    xu = jnp.transpose(jnp.repeat(x, 2, axis=3), (0, 2, 1, 3)).astype(cdtype)
    w4 = jnp.transpose(weight, (2, 3, 1, 0)).astype(cdtype)        # (2, 2, C_out, C_in)
    b2 = bias.reshape(c_out, 1).astype(jnp.float32)

    in_item = jnp.dtype(cdtype).itemsize
    out_item = jnp.dtype(out_dtype).itemsize
    per_outrow = (c_total + c_skip) * ws * out_item + (c_in * w2 * in_item) // 2
    th = _pick_row_tile(h, hs, d_h, per_outrow)
    th_out = hs if d_h != 0 else 2 * th
    grid = (b_n, max(h // th, 1))

    # VMEM working-set estimate (double-buffered activation/skip/out blocks + weights).
    vmem_est = (2 * th * c_in * w2 * in_item
                + 2 * c_skip * th_out * ws * out_item
                + 2 * c_total * th_out * ws * out_item
                + 2 * 4 * c_out * c_in * in_item
                + 2 * c_out * 4)
    cp_kwargs = dict(dimension_semantics=("parallel", "parallel"))
    if vmem_est > 16 * 2 ** 20:
        cp_kwargs["vmem_limit_bytes"] = int(min(vmem_est * 3 // 2, 64 * 2 ** 20))

    flops = 2 * 4 * c_out * c_in * w2 * h * b_n
    bytes_accessed = (math.prod(xu.shape) * in_item
                      + math.prod(skip.shape) * jnp.dtype(skip.dtype).itemsize
                      + math.prod(w4.shape) * in_item
                      + c_out * 4
                      + b_n * c_total * hs * ws * out_item)
    cost = pl.CostEstimate(flops=flops, transcendentals=0, bytes_accessed=int(bytes_accessed))

    kernel = functools.partial(
        _up_conv_2x2_kernel,
        c_skip=c_skip, c_out=c_out, w2=w2, p_h0=p_h0, p_w0=p_w0,
        col_lo=col_lo, col_hi=col_hi, hs=hs, th=th,
        guard_rows=(d_h < 0), zero_fill=(d_h > 0 or d_w > 0),
    )

    vmem = pltpu.MemorySpace.VMEM
    return pl.pallas_call(
        kernel,
        out_shape=jax.ShapeDtypeStruct((b_n, c_total, hs, ws), out_dtype),
        grid_spec=pltpu.PrefetchScalarGridSpec(
            num_scalar_prefetch=0,
            grid=grid,
            in_specs=[
                pl.BlockSpec((1, th, c_in, w2), lambda b, r: (b, r, 0, 0),
                             memory_space=vmem),
                pl.BlockSpec((1, c_skip, th_out, ws), lambda b, r: (b, 0, r, 0),
                             memory_space=vmem),
                pl.BlockSpec((2, 2, c_out, c_in), lambda b, r: (0, 0, 0, 0),
                             memory_space=vmem),
                pl.BlockSpec((c_out, 1), lambda b, r: (0, 0),
                             memory_space=vmem),
            ],
            out_specs=pl.BlockSpec((1, c_total, th_out, ws), lambda b, r: (b, 0, r, 0),
                                   memory_space=vmem),
        ),
        compiler_params=pltpu.CompilerParams(**cp_kwargs),
        cost_estimate=cost,
    )(xu, skip, w4, b2)


def _reference(x, skip, weight, bias):
    # pure-JAX reference of ConvTranspose2d(k=2, s=2) + F.pad + concat (dH, dW >= 0)
    b, c_in, h, w = x.shape
    c_out = weight.shape[1]
    y = jnp.einsum("bchw,cokl->bohkwl", x, weight)
    y = y.reshape(b, c_out, 2 * h, 2 * w) + bias[None, :, None, None]
    d_h = skip.shape[2] - y.shape[2]
    d_w = skip.shape[3] - y.shape[3]
    y = jnp.pad(y, ((0, 0), (0, 0),
                    (d_h // 2, d_h - d_h // 2), (d_w // 2, d_w - d_w // 2)))
    return jnp.concatenate([skip, y], axis=1)


if __name__ == "__main__":
    key = jax.random.PRNGKey(0)
    k_x, k_s, k_w, k_b, k_s2 = jax.random.split(key, 5)

    n_channels = 4                      # C_in
    c_out = n_channels // 2             # 2
    B, H, W = 2, 8, 8                   # x spatial; upsampled -> 16x16

    x = jax.random.normal(k_x, (B, n_channels, H, W), dtype=jnp.float32)
    weight = 0.1 * jax.random.normal(k_w, (n_channels, c_out, 2, 2), dtype=jnp.float32)
    bias = 0.1 * jax.random.normal(k_b, (c_out,), dtype=jnp.float32)

    # case 1: standard U-Net shapes (skip exactly 2x the input, no padding)
    skip = jax.random.normal(k_s, (B, c_out, 2 * H, 2 * W), dtype=jnp.float32)
    out = jax.block_until_ready(up_conv_2x2(x, skip, weight, bias))
    ref = _reference(x, skip, weight, bias)
    assert out.shape == (B, 2 * c_out, 2 * H, 2 * W), out.shape
    assert jnp.allclose(out, ref, atol=1e-5, rtol=1e-5), "case 1 mismatch vs reference"

    # case 2: skip larger than the upsampled map (exercises the fused F.pad path, odd width)
    skip2 = jax.random.normal(k_s2, (B, 3, 2 * H + 2, 2 * W + 1), dtype=jnp.float32)
    out2 = jax.block_until_ready(up_conv_2x2(x, skip2, weight, bias))
    ref2 = _reference(x, skip2, weight, bias)
    assert out2.shape == (B, 3 + c_out, 2 * H + 2, 2 * W + 1), out2.shape
    assert jnp.allclose(out2, ref2, atol=1e-5, rtol=1e-5), "case 2 mismatch vs reference"

    print("KERNEL_OK")
</pallas_src>

<mosaic_0001>
module attributes {stable_mosaic.version = 11 : i64} {
  func.func @_up_conv_2x2_kernel(%arg0: i32, %arg1: i32, %arg2: memref<1x8x4x16xf32, #tpu.memory_space<vmem>>, %arg3: memref<1x2x16x16xf32, #tpu.memory_space<vmem>>, %arg4: memref<2x2x2x4xf32, #tpu.memory_space<vmem>>, %arg5: memref<2x1xf32, #tpu.memory_space<vmem>>, %arg6: memref<1x4x16x16xf32, #tpu.memory_space<vmem>>) attributes {dimension_semantics = [#tpu.dimension_semantics<parallel>, #tpu.dimension_semantics<parallel>], iteration_bounds = array<i64: 2, 1>, scalar_prefetch = 0 : i64, scratch_operands = 0 : i64, tpu.core_type = #tpu.core_type<tc>, window_params = [{transform_indices = @transform_0, window_bounds = array<i64: 1, 8, 4, 16>}, {transform_indices = @transform_1, window_bounds = array<i64: 1, 2, 16, 16>}, {pipeline_mode = #tpu.pipeline_mode<synchronous>, transform_indices = @transform_2, window_bounds = array<i64: 2, 2, 2, 4>}, {pipeline_mode = #tpu.pipeline_mode<synchronous>, transform_indices = @transform_3, window_bounds = array<i64: 2, 1>}, {transform_indices = @transform_4, window_bounds = array<i64: 1, 4, 16, 16>}]} {
    %c0 = arith.constant 0 : index
    %c0_0 = arith.constant 0 : index
    %c0_1 = arith.constant 0 : index
    %c0_2 = arith.constant 0 : index
    %0 = vector.load %arg3[%c0, %c0_0, %c0_1, %c0_2] : memref<1x2x16x16xf32, #tpu.memory_space<vmem>>, vector<1x2x16x16xf32>
    %1 = vector.shape_cast %0 : vector<1x2x16x16xf32> to vector<2x16x16xf32>
    %c0_3 = arith.constant 0 : index
    %c0_4 = arith.constant 0 : index
    %c0_5 = arith.constant 0 : index
    %c0_6 = arith.constant 0 : index
    %2 = vector.load %arg6[%c0_3, %c0_4, %c0_5, %c0_6] : memref<1x4x16x16xf32, #tpu.memory_space<vmem>>, vector<1x2x16x16xf32>
    %3 = vector.shape_cast %2 : vector<1x2x16x16xf32> to vector<2x16x16xf32>
    %4 = vector.shape_cast %1 : vector<2x16x16xf32> to vector<1x2x16x16xf32>
    tpu.vector_store %arg6[%c0_3, %c0_4, %c0_5, %c0_6], %4 {strides = array<i32>} : memref<1x4x16x16xf32, #tpu.memory_space<vmem>>, vector<1x2x16x16xf32>,
    %c0_7 = arith.constant 0 : index
    %c0_8 = arith.constant 0 : index
    %c0_9 = arith.constant 0 : index
    %c0_10 = arith.constant 0 : index
    %5 = vector.load %arg4[%c0_7, %c0_8, %c0_9, %c0_10] : memref<2x2x2x4xf32, #tpu.memory_space<vmem>>, vector<1x1x2x4xf32>
    %6 = vector.shape_cast %5 : vector<1x1x2x4xf32> to vector<2x4xf32>
    %c0_11 = arith.constant 0 : index
    %c1 = arith.constant 1 : index
    %c0_12 = arith.constant 0 : index
    %c0_13 = arith.constant 0 : index
    %7 = vector.load %arg4[%c0_11, %c1, %c0_12, %c0_13] : memref<2x2x2x4xf32, #tpu.memory_space<vmem>>, vector<1x1x2x4xf32>
    %8 = vector.shape_cast %7 : vector<1x1x2x4xf32> to vector<2x4xf32>
    %c1_14 = arith.constant 1 : index
    %c0_15 = arith.constant 0 : index
    %c0_16 = arith.constant 0 : index
    %c0_17 = arith.constant 0 : index
    %9 = vector.load %arg4[%c1_14, %c0_15, %c0_16, %c0_17] : memref<2x2x2x4xf32, #tpu.memory_space<vmem>>, vector<1x1x2x4xf32>
    %10 = vector.shape_cast %9 : vector<1x1x2x4xf32> to vector<2x4xf32>
    %c1_18 = arith.constant 1 : index
    %c1_19 = arith.constant 1 : index
    %c0_20 = arith.constant 0 : index
    %c0_21 = arith.constant 0 : index
    %11 = vector.load %arg4[%c1_18, %c1_19, %c0_20, %c0_21] : memref<2x2x2x4xf32, #tpu.memory_space<vmem>>, vector<1x1x2x4xf32>
    %12 = vector.shape_cast %11 : vector<1x1x2x4xf32> to vector<2x4xf32>
    %13 = tpu.iota {dimensions = array<i32: 1>} : vector<2x16xi32>
    %c1_i32 = arith.constant 1 : i32
    %14 = vector.broadcast %c1_i32 : i32 to vector<2x16xi32>
    %15 = arith.andi %13, %14 : vector<2x16xi32>
    %c0_i32 = arith.constant 0 : i32
    %16 = vector.broadcast %c0_i32 : i32 to vector<2x16xi32>
    %17 = arith.cmpi eq, %15, %16 : vector<2x16xi32>
    %c0_22 = arith.constant 0 : index
    %c0_23 = arith.constant 0 : index
    %18 = vector.load %arg5[%c0_22, %c0_23] : memref<2x1xf32, #tpu.memory_space<vmem>>, vector<2x1xf32>
    %19 = vector.shape_cast %18 : vector<2x1xf32> to vector<2x1xf32>
    %20 = vector.broadcast %19 : vector<2x1xf32> to vector<2x16xf32>
    %c0_24 = arith.constant 0 : index
    %c0_25 = arith.constant 0 : index
    %c0_26 = arith.constant 0 : index
    %c0_27 = arith.constant 0 : index
    %21 = vector.load %arg2[%c0_24, %c0_25, %c0_26, %c0_27] : memref<1x8x4x16xf32, #tpu.memory_space<vmem>>, vector<1x1x4x16xf32>
    %22 = vector.shape_cast %21 : vector<1x1x4x16xf32> to vector<4x16xf32>
    %cst = arith.constant dense<0.000000e+00> : vector<2x16xf32>
    %23 = tpu.matmul %6, %22, %cst {dimension_numbers = #tpu.dot_dimension_numbers<[1], [0], [0], [1], [0, 0, 1, 1], [], []>} : vector<2x4xf32>, vector<4x16xf32>, vector<2x16xf32> -> vector<2x16xf32>
    %cst_28 = arith.constant dense<0.000000e+00> : vector<2x16xf32>
    %24 = tpu.matmul %8, %22, %cst_28 {dimension_numbers = #tpu.dot_dimension_numbers<[1], [0], [0], [1], [0, 0, 1, 1], [], []>} : vector<2x4xf32>, vector<4x16xf32>, vector<2x16xf32> -> vector<2x16xf32>
    %cst_29 = arith.constant dense<0.000000e+00> : vector<2x16xf32>
    %25 = tpu.matmul %10, %22, %cst_29 {dimension_numbers = #tpu.dot_dimension_numbers<[1], [0], [0], [1], [0, 0, 1, 1], [], []>} : vector<2x4xf32>, vector<4x16xf32>, vector<2x16xf32> -> vector<2x16xf32>
    %cst_30 = arith.constant dense<0.000000e+00> : vector<2x16xf32>
    %26 = tpu.matmul %12, %22, %cst_30 {dimension_numbers = #tpu.dot_dimension_numbers<[1], [0], [0], [1], [0, 0, 1, 1], [], []>} : vector<2x4xf32>, vector<4x16xf32>, vector<2x16xf32> -> vector<2x16xf32>
    %27 = arith.select %17, %23, %24 : vector<2x16xi1>, vector<2x16xf32>
    %28 = arith.addf %27, %20 : vector<2x16xf32>
    %29 = arith.select %17, %25, %26 : vector<2x16xi1>, vector<2x16xf32>
    %30 = arith.addf %29, %20 : vector<2x16xf32>
    %c0_31 = arith.constant 0 : index
    %c2 = arith.constant 2 : index
    %c0_32 = arith.constant 0 : index
    %c0_33 = arith.constant 0 : index
    %31 = vector.load %arg6[%c0_31, %c2, %c0_32, %c0_33] : memref<1x4x16x16xf32, #tpu.memory_space<vmem>>, vector<1x2x1x16xf32>
    %32 = vector.shape_cast %31 : vector<1x2x1x16xf32> to vector<2x16xf32>
    %33 = vector.shape_cast %28 : vector<2x16xf32> to vector<1x2x1x16xf32>
    tpu.vector_store %arg6[%c0_31, %c2, %c0_32, %c0_33], %33 {strides = array<i32>} : memref<1x4x16x16xf32, #tpu.memory_space<vmem>>, vector<1x2x1x16xf32>,
    %c0_34 = arith.constant 0 : index
    %c2_35 = arith.constant 2 : index
    %c1_36 = arith.constant 1 : index
    %c0_37 = arith.constant 0 : index
    %34 = vector.load %arg6[%c0_34, %c2_35, %c1_36, %c0_37] : memref<1x4x16x16xf32, #tpu.memory_space<vmem>>, vector<1x2x1x16xf32>
    %35 = vector.shape_cast %34 : vector<1x2x1x16xf32> to vector<2x16xf32>
    %36 = vector.shape_cast %30 : vector<2x16xf32> to vector<1x2x1x16xf32>
    tpu.vector_store %arg6[%c0_34, %c2_35, %c1_36, %c0_37], %36 {strides = array<i32>} : memref<1x4x16x16xf32, #tpu.memory_space<vmem>>, vector<1x2x1x16xf32>,
    %c0_38 = arith.constant 0 : index
    %c1_39 = arith.constant 1 : index
    %c0_40 = arith.constant 0 : index
    %c0_41 = arith.constant 0 : index
    %37 = vector.load %arg2[%c0_38, %c1_39, %c0_40, %c0_41] : memref<1x8x4x16xf32, #tpu.memory_space<vmem>>, vector<1x1x4x16xf32>
    %38 = vector.shape_cast %37 : vector<1x1x4x16xf32> to vector<4x16xf32>
    %cst_42 = arith.constant dense<0.000000e+00> : vector<2x16xf32>
    %39 = tpu.matmul %6, %38, %cst_42 {dimension_numbers = #tpu.dot_dimension_numbers<[1], [0], [0], [1], [0, 0, 1, 1], [], []>} : vector<2x4xf32>, vector<4x16xf32>, vector<2x16xf32> -> vector<2x16xf32>
    %cst_43 = arith.constant dense<0.000000e+00> : vector<2x16xf32>
    %40 = tpu.matmul %8, %38, %cst_43 {dimension_numbers = #tpu.dot_dimension_numbers<[1], [0], [0], [1], [0, 0, 1, 1], [], []>} : vector<2x4xf32>, vector<4x16xf32>, vector<2x16xf32> -> vector<2x16xf32>
    %cst_44 = arith.constant dense<0.000000e+00> : vector<2x16xf32>
    %41 = tpu.matmul %10, %38, %cst_44 {dimension_numbers = #tpu.dot_dimension_numbers<[1], [0], [0], [1], [0, 0, 1, 1], [], []>} : vector<2x4xf32>, vector<4x16xf32>, vector<2x16xf32> -> vector<2x16xf32>
    %cst_45 = arith.constant dense<0.000000e+00> : vector<2x16xf32>
    %42 = tpu.matmul %12, %38, %cst_45 {dimension_numbers = #tpu.dot_dimension_numbers<[1], [0], [0], [1], [0, 0, 1, 1], [], []>} : vector<2x4xf32>, vector<4x16xf32>, vector<2x16xf32> -> vector<2x16xf32>
    %43 = arith.select %17, %39, %40 : vector<2x16xi1>, vector<2x16xf32>
    %44 = arith.addf %43, %20 : vector<2x16xf32>
    %45 = arith.select %17, %41, %42 : vector<2x16xi1>, vector<2x16xf32>
    %46 = arith.addf %45, %20 : vector<2x16xf32>
    %c0_46 = arith.constant 0 : index
    %c2_47 = arith.constant 2 : index
    %c2_48 = arith.constant 2 : index
    %c0_49 = arith.constant 0 : index
    %47 = vector.load %arg6[%c0_46, %c2_47, %c2_48, %c0_49] : memref<1x4x16x16xf32, #tpu.memory_space<vmem>>, vector<1x2x1x16xf32>
    %48 = vector.shape_cast %47 : vector<1x2x1x16xf32> to vector<2x16xf32>
    %49 = vector.shape_cast %44 : vector<2x16xf32> to vector<1x2x1x16xf32>
    tpu.vector_store %arg6[%c0_46, %c2_47, %c2_48, %c0_49], %49 {strides = array<i32>} : memref<1x4x16x16xf32, #tpu.memory_space<vmem>>, vector<1x2x1x16xf32>,
    %c0_50 = arith.constant 0 : index
    %c2_51 = arith.constant 2 : index
    %c3 = arith.constant 3 : index
    %c0_52 = arith.constant 0 : index
    %50 = vector.load %arg6[%c0_50, %c2_51, %c3, %c0_52] : memref<1x4x16x16xf32, #tpu.memory_space<vmem>>, vector<1x2x1x16xf32>
    %51 = vector.shape_cast %50 : vector<1x2x1x16xf32> to vector<2x16xf32>
    %52 = vector.shape_cast %46 : vector<2x16xf32> to vector<1x2x1x16xf32>
    tpu.vector_store %arg6[%c0_50, %c2_51, %c3, %c0_52], %52 {strides = array<i32>} : memref<1x4x16x16xf32, #tpu.memory_space<vmem>>, vector<1x2x1x16xf32>,
    %c0_53 = arith.constant 0 : index
    %c2_54 = arith.constant 2 : index
    %c0_55 = arith.constant 0 : index
    %c0_56 = arith.constant 0 : index
    %53 = vector.load %arg2[%c0_53, %c2_54, %c0_55, %c0_56] : memref<1x8x4x16xf32, #tpu.memory_space<vmem>>, vector<1x1x4x16xf32>
    %54 = vector.shape_cast %53 : vector<1x1x4x16xf32> to vector<4x16xf32>
    %cst_57 = arith.constant dense<0.000000e+00> : vector<2x16xf32>
    %55 = tpu.matmul %6, %54, %cst_57 {dimension_numbers = #tpu.dot_dimension_numbers<[1], [0], [0], [1], [0, 0, 1, 1], [], []>} : vector<2x4xf32>, vector<4x16xf32>, vector<2x16xf32> -> vector<2x16xf32>
    %cst_58 = arith.constant dense<0.000000e+00> : vector<2x16xf32>
    %56 = tpu.matmul %8, %54, %cst_58 {dimension_numbers = #tpu.dot_dimension_numbers<[1], [0], [0], [1], [0, 0, 1, 1], [], []>} : vector<2x4xf32>, vector<4x16xf32>, vector<2x16xf32> -> vector<2x16xf32>
    %cst_59 = arith.constant dense<0.000000e+00> : vector<2x16xf32>
    %57 = tpu.matmul %10, %54, %cst_59 {dimension_numbers = #tpu.dot_dimension_numbers<[1], [0], [0], [1], [0, 0, 1, 1], [], []>} : vector<2x4xf32>, vector<4x16xf32>, vector<2x16xf32> -> vector<2x16xf32>
    %cst_60 = arith.constant dense<0.000000e+00> : vector<2x16xf32>
    %58 = tpu.matmul %12, %54, %cst_60 {dimension_numbers = #tpu.dot_dimension_numbers<[1], [0], [0], [1], [0, 0, 1, 1], [], []>} : vector<2x4xf32>, vector<4x16xf32>, vector<2x16xf32> -> vector<2x16xf32>
    %59 = arith.select %17, %55, %56 : vector<2x16xi1>, vector<2x16xf32>
    %60 = arith.addf %59, %20 : vector<2x16xf32>
    %61 = arith.select %17, %57, %58 : vector<2x16xi1>, vector<2x16xf32>
    %62 = arith.addf %61, %20 : vector<2x16xf32>
    %c0_61 = arith.constant 0 : index
    %c2_62 = arith.constant 2 : index
    %c4 = arith.constant 4 : index
    %c0_63 = arith.constant 0 : index
    %63 = vector.load %arg6[%c0_61, %c2_62, %c4, %c0_63] : memref<1x4x16x16xf32, #tpu.memory_space<vmem>>, vector<1x2x1x16xf32>
    %64 = vector.shape_cast %63 : vector<1x2x1x16xf32> to vector<2x16xf32>
    %65 = vector.shape_cast %60 : vector<2x16xf32> to vector<1x2x1x16xf32>
    tpu.vector_store %arg6[%c0_61, %c2_62, %c4, %c0_63], %65 {strides = array<i32>} : memref<1x4x16x16xf32, #tpu.memory_space<vmem>>, vector<1x2x1x16xf32>,
    %c0_64 = arith.constant 0 : index
    %c2_65 = arith.constant 2 : index
    %c5 = arith.constant 5 : index
    %c0_66 = arith.constant 0 : index
    %66 = vector.load %arg6[%c0_64, %c2_65, %c5, %c0_66] : memref<1x4x16x16xf32, #tpu.memory_space<vmem>>, vector<1x2x1x16xf32>
    %67 = vector.shape_cast %66 : vector<1x2x1x16xf32> to vector<2x16xf32>
    %68 = vector.shape_cast %62 : vector<2x16xf32> to vector<1x2x1x16xf32>
    tpu.vector_store %arg6[%c0_64, %c2_65, %c5, %c0_66], %68 {strides = array<i32>} : memref<1x4x16x16xf32, #tpu.memory_space<vmem>>, vector<1x2x1x16xf32>,
    %c0_67 = arith.constant 0 : index
    %c3_68 = arith.constant 3 : index
    %c0_69 = arith.constant 0 : index
    %c0_70 = arith.constant 0 : index
    %69 = vector.load %arg2[%c0_67, %c3_68, %c0_69, %c0_70] : memref<1x8x4x16xf32, #tpu.memory_space<vmem>>, vector<1x1x4x16xf32>
    %70 = vector.shape_cast %69 : vector<1x1x4x16xf32> to vector<4x16xf32>
    %cst_71 = arith.constant dense<0.000000e+00> : vector<2x16xf32>
    %71 = tpu.matmul %6, %70, %cst_71 {dimension_numbers = #tpu.dot_dimension_numbers<[1], [0], [0], [1], [0, 0, 1, 1], [], []>} : vector<2x4xf32>, vector<4x16xf32>, vector<2x16xf32> -> vector<2x16xf32>
    %cst_72 = arith.constant dense<0.000000e+00> : vector<2x16xf32>
    %72 = tpu.matmul %8, %70, %cst_72 {dimension_numbers = #tpu.dot_dimension_numbers<[1], [0], [0], [1], [0, 0, 1, 1], [], []>} : vector<2x4xf32>, vector<4x16xf32>, vector<2x16xf32> -> vector<2x16xf32>
    %cst_73 = arith.constant dense<0.000000e+00> : vector<2x16xf32>
    %73 = tpu.matmul %10, %70, %cst_73 {dimension_numbers = #tpu.dot_dimension_numbers<[1], [0], [0], [1], [0, 0, 1, 1], [], []>} : vector<2x4xf32>, vector<4x16xf32>, vector<2x16xf32> -> vector<2x16xf32>
    %cst_74 = arith.constant dense<0.000000e+00> : vector<2x16xf32>
    %74 = tpu.matmul %12, %70, %cst_74 {dimension_numbers = #tpu.dot_dimension_numbers<[1], [0], [0], [1], [0, 0, 1, 1], [], []>} : vector<2x4xf32>, vector<4x16xf32>, vector<2x16xf32> -> vector<2x16xf32>
    %75 = arith.select %17, %71, %72 : vector<2x16xi1>, vector<2x16xf32>
    %76 = arith.addf %75, %20 : vector<2x16xf32>
    %77 = arith.select %17, %73, %74 : vector<2x16xi1>, vector<2x16xf32>
    %78 = arith.addf %77, %20 : vector<2x16xf32>
    %c0_75 = arith.constant 0 : index
    %c2_76 = arith.constant 2 : index
    %c6 = arith.constant 6 : index
    %c0_77 = arith.constant 0 : index
    %79 = vector.load %arg6[%c0_75, %c2_76, %c6, %c0_77] : memref<1x4x16x16xf32, #tpu.memory_space<vmem>>, vector<1x2x1x16xf32>
    %80 = vector.shape_cast %79 : vector<1x2x1x16xf32> to vector<2x16xf32>
    %81 = vector.shape_cast %76 : vector<2x16xf32> to vector<1x2x1x16xf32>
    tpu.vector_store %arg6[%c0_75, %c2_76, %c6, %c0_77], %81 {strides = array<i32>} : memref<1x4x16x16xf32, #tpu.memory_space<vmem>>, vector<1x2x1x16xf32>,
    %c0_78 = arith.constant 0 : index
    %c2_79 = arith.constant 2 : index
    %c7 = arith.constant 7 : index
    %c0_80 = arith.constant 0 : index
    %82 = vector.load %arg6[%c0_78, %c2_79, %c7, %c0_80] : memref<1x4x16x16xf32, #tpu.memory_space<vmem>>, vector<1x2x1x16xf32>
    %83 = vector.shape_cast %82 : vector<1x2x1x16xf32> to vector<2x16xf32>
    %84 = vector.shape_cast %78 : vector<2x16xf32> to vector<1x2x1x16xf32>
    tpu.vector_store %arg6[%c0_78, %c2_79, %c7, %c0_80], %84 {strides = array<i32>} : memref<1x4x16x16xf32, #tpu.memory_space<vmem>>, vector<1x2x1x16xf32>,
    %c0_81 = arith.constant 0 : index
    %c4_82 = arith.constant 4 : index
    %c0_83 = arith.constant 0 : index
    %c0_84 = arith.constant 0 : index
    %85 = vector.load %arg2[%c0_81, %c4_82, %c0_83, %c0_84] : memref<1x8x4x16xf32, #tpu.memory_space<vmem>>, vector<1x1x4x16xf32>
    %86 = vector.shape_cast %85 : vector<1x1x4x16xf32> to vector<4x16xf32>
    %cst_85 = arith.constant dense<0.000000e+00> : vector<2x16xf32>
    %87 = tpu.matmul %6, %86, %cst_85 {dimension_numbers = #tpu.dot_dimension_numbers<[1], [0], [0], [1], [0, 0, 1, 1], [], []>} : vector<2x4xf32>, vector<4x16xf32>, vector<2x16xf32> -> vector<2x16xf32>
    %cst_86 = arith.constant dense<0.000000e+00> : vector<2x16xf32>
    %88 = tpu.matmul %8, %86, %cst_86 {dimension_numbers = #tpu.dot_dimension_numbers<[1], [0], [0], [1], [0, 0, 1, 1], [], []>} : vector<2x4xf32>, vector<4x16xf32>, vector<2x16xf32> -> vector<2x16xf32>
    %cst_87 = arith.constant dense<0.000000e+00> : vector<2x16xf32>
    %89 = tpu.matmul %10, %86, %cst_87 {dimension_numbers = #tpu.dot_dimension_numbers<[1], [0], [0], [1], [0, 0, 1, 1], [], []>} : vector<2x4xf32>, vector<4x16xf32>, vector<2x16xf32> -> vector<2x16xf32>
    %cst_88 = arith.constant dense<0.000000e+00> : vector<2x16xf32>
    %90 = tpu.matmul %12, %86, %cst_88 {dimension_numbers = #tpu.dot_dimension_numbers<[1], [0], [0], [1], [0, 0, 1, 1], [], []>} : vector<2x4xf32>, vector<4x16xf32>, vector<2x16xf32> -> vector<2x16xf32>
    %91 = arith.select %17, %87, %88 : vector<2x16xi1>, vector<2x16xf32>
    %92 = arith.addf %91, %20 : vector<2x16xf32>
    %93 = arith.select %17, %89, %90 : vector<2x16xi1>, vector<2x16xf32>
    %94 = arith.addf %93, %20 : vector<2x16xf32>
    %c0_89 = arith.constant 0 : index
    %c2_90 = arith.constant 2 : index
    %c8 = arith.constant 8 : index
    %c0_91 = arith.constant 0 : index
    %95 = vector.load %arg6[%c0_89, %c2_90, %c8, %c0_91] : memref<1x4x16x16xf32, #tpu.memory_space<vmem>>, vector<1x2x1x16xf32>
    %96 = vector.shape_cast %95 : vector<1x2x1x16xf32> to vector<2x16xf32>
    %97 = vector.shape_cast %92 : vector<2x16xf32> to vector<1x2x1x16xf32>
    tpu.vector_store %arg6[%c0_89, %c2_90, %c8, %c0_91], %97 {strides = array<i32>} : memref<1x4x16x16xf32, #tpu.memory_space<vmem>>, vector<1x2x1x16xf32>,
    %c0_92 = arith.constant 0 : index
    %c2_93 = arith.constant 2 : index
    %c9 = arith.constant 9 : index
    %c0_94 = arith.constant 0 : index
    %98 = vector.load %arg6[%c0_92, %c2_93, %c9, %c0_94] : memref<1x4x16x16xf32, #tpu.memory_space<vmem>>, vector<1x2x1x16xf32>
    %99 = vector.shape_cast %98 : vector<1x2x1x16xf32> to vector<2x16xf32>
    %100 = vector.shape_cast %94 : vector<2x16xf32> to vector<1x2x1x16xf32>
    tpu.vector_store %arg6[%c0_92, %c2_93, %c9, %c0_94], %100 {strides = array<i32>} : memref<1x4x16x16xf32, #tpu.memory_space<vmem>>, vector<1x2x1x16xf32>,
    %c0_95 = arith.constant 0 : index
    %c5_96 = arith.constant 5 : index
    %c0_97 = arith.constant 0 : index
    %c0_98 = arith.constant 0 : index
    %101 = vector.load %arg2[%c0_95, %c5_96, %c0_97, %c0_98] : memref<1x8x4x16xf32, #tpu.memory_space<vmem>>, vector<1x1x4x16xf32>
    %102 = vector.shape_cast %101 : vector<1x1x4x16xf32> to vector<4x16xf32>
    %cst_99 = arith.constant dense<0.000000e+00> : vector<2x16xf32>
    %103 = tpu.matmul %6, %102, %cst_99 {dimension_numbers = #tpu.dot_dimension_numbers<[1], [0], [0], [1], [0, 0, 1, 1], [], []>} : vector<2x4xf32>, vector<4x16xf32>, vector<2x16xf32> -> vector<2x16xf32>
    %cst_100 = arith.constant dense<0.000000e+00> : vector<2x16xf32>
    %104 = tpu.matmul %8, %102, %cst_100 {dimension_numbers = #tpu.dot_dimension_numbers<[1], [0], [0], [1], [0, 0, 1, 1], [], []>} : vector<2x4xf32>, vector<4x16xf32>, vector<2x16xf32> -> vector<2x16xf32>
    %cst_101 = arith.constant dense<0.000000e+00> : vector<2x16xf32>
    %105 = tpu.matmul %10, %102, %cst_101 {dimension_numbers = #tpu.dot_dimension_numbers<[1], [0], [0], [1], [0, 0, 1, 1], [], []>} : vector<2x4xf32>, vector<4x16xf32>, vector<2x16xf32> -> vector<2x16xf32>
    %cst_102 = arith.constant dense<0.000000e+00> : vector<2x16xf32>
    %106 = tpu.matmul %12, %102, %cst_102 {dimension_numbers = #tpu.dot_dimension_numbers<[1], [0], [0], [1], [0, 0, 1, 1], [], []>} : vector<2x4xf32>, vector<4x16xf32>, vector<2x16xf32> -> vector<2x16xf32>
    %107 = arith.select %17, %103, %104 : vector<2x16xi1>, vector<2x16xf32>
    %108 = arith.addf %107, %20 : vector<2x16xf32>
    %109 = arith.select %17, %105, %106 : vector<2x16xi1>, vector<2x16xf32>
    %110 = arith.addf %109, %20 : vector<2x16xf32>
    %c0_103 = arith.constant 0 : index
    %c2_104 = arith.constant 2 : index
    %c10 = arith.constant 10 : index
    %c0_105 = arith.constant 0 : index
    %111 = vector.load %arg6[%c0_103, %c2_104, %c10, %c0_105] : memref<1x4x16x16xf32, #tpu.memory_space<vmem>>, vector<1x2x1x16xf32>
    %112 = vector.shape_cast %111 : vector<1x2x1x16xf32> to vector<2x16xf32>
    %113 = vector.shape_cast %108 : vector<2x16xf32> to vector<1x2x1x16xf32>
    tpu.vector_store %arg6[%c0_103, %c2_104, %c10, %c0_105], %113 {strides = array<i32>} : memref<1x4x16x16xf32, #tpu.memory_space<vmem>>, vector<1x2x1x16xf32>,
    %c0_106 = arith.constant 0 : index
    %c2_107 = arith.constant 2 : index
    %c11 = arith.constant 11 : index
    %c0_108 = arith.constant 0 : index
    %114 = vector.load %arg6[%c0_106, %c2_107, %c11, %c0_108] : memref<1x4x16x16xf32, #tpu.memory_space<vmem>>, vector<1x2x1x16xf32>
    %115 = vector.shape_cast %114 : vector<1x2x1x16xf32> to vector<2x16xf32>
    %116 = vector.shape_cast %110 : vector<2x16xf32> to vector<1x2x1x16xf32>
    tpu.vector_store %arg6[%c0_106, %c2_107, %c11, %c0_108], %116 {strides = array<i32>} : memref<1x4x16x16xf32, #tpu.memory_space<vmem>>, vector<1x2x1x16xf32>,
    %c0_109 = arith.constant 0 : index
    %c6_110 = arith.constant 6 : index
    %c0_111 = arith.constant 0 : index
    %c0_112 = arith.constant 0 : index
    %117 = vector.load %arg2[%c0_109, %c6_110, %c0_111, %c0_112] : memref<1x8x4x16xf32, #tpu.memory_space<vmem>>, vector<1x1x4x16xf32>
    %118 = vector.shape_cast %117 : vector<1x1x4x16xf32> to vector<4x16xf32>
    %cst_113 = arith.constant dense<0.000000e+00> : vector<2x16xf32>
    %119 = tpu.matmul %6, %118, %cst_113 {dimension_numbers = #tpu.dot_dimension_numbers<[1], [0], [0], [1], [0, 0, 1, 1], [], []>} : vector<2x4xf32>, vector<4x16xf32>, vector<2x16xf32> -> vector<2x16xf32>
    %cst_114 = arith.constant dense<0.000000e+00> : vector<2x16xf32>
    %120 = tpu.matmul %8, %118, %cst_114 {dimension_numbers = #tpu.dot_dimension_numbers<[1], [0], [0], [1], [0, 0, 1, 1], [], []>} : vector<2x4xf32>, vector<4x16xf32>, vector<2x16xf32> -> vector<2x16xf32>
    %cst_115 = arith.constant dense<0.000000e+00> : vector<2x16xf32>
    %121 = tpu.matmul %10, %118, %cst_115 {dimension_numbers = #tpu.dot_dimension_numbers<[1], [0], [0], [1], [0, 0, 1, 1], [], []>} : vector<2x4xf32>, vector<4x16xf32>, vector<2x16xf32> -> vector<2x16xf32>
    %cst_116 = arith.constant dense<0.000000e+00> : vector<2x16xf32>
    %122 = tpu.matmul %12, %118, %cst_116 {dimension_numbers = #tpu.dot_dimension_numbers<[1], [0], [0], [1], [0, 0, 1, 1], [], []>} : vector<2x4xf32>, vector<4x16xf32>, vector<2x16xf32> -> vector<2x16xf32>
    %123 = arith.select %17, %119, %120 : vector<2x16xi1>, vector<2x16xf32>
    %124 = arith.addf %123, %20 : vector<2x16xf32>
    %125 = arith.select %17, %121, %122 : vector<2x16xi1>, vector<2x16xf32>
    %126 = arith.addf %125, %20 : vector<2x16xf32>
    %c0_117 = arith.constant 0 : index
    %c2_118 = arith.constant 2 : index
    %c12 = arith.constant 12 : index
    %c0_119 = arith.constant 0 : index
    %127 = vector.load %arg6[%c0_117, %c2_118, %c12, %c0_119] : memref<1x4x16x16xf32, #tpu.memory_space<vmem>>, vector<1x2x1x16xf32>
    %128 = vector.shape_cast %127 : vector<1x2x1x16xf32> to vector<2x16xf32>
    %129 = vector.shape_cast %124 : vector<2x16xf32> to vector<1x2x1x16xf32>
    tpu.vector_store %arg6[%c0_117, %c2_118, %c12, %c0_119], %129 {strides = array<i32>} : memref<1x4x16x16xf32, #tpu.memory_space<vmem>>, vector<1x2x1x16xf32>,
    %c0_120 = arith.constant 0 : index
    %c2_121 = arith.constant 2 : index
    %c13 = arith.constant 13 : index
    %c0_122 = arith.constant 0 : index
    %130 = vector.load %arg6[%c0_120, %c2_121, %c13, %c0_122] : memref<1x4x16x16xf32, #tpu.memory_space<vmem>>, vector<1x2x1x16xf32>
    %131 = vector.shape_cast %130 : vector<1x2x1x16xf32> to vector<2x16xf32>
    %132 = vector.shape_cast %126 : vector<2x16xf32> to vector<1x2x1x16xf32>
    tpu.vector_store %arg6[%c0_120, %c2_121, %c13, %c0_122], %132 {strides = array<i32>} : memref<1x4x16x16xf32, #tpu.memory_space<vmem>>, vector<1x2x1x16xf32>,
    %c0_123 = arith.constant 0 : index
    %c7_124 = arith.constant 7 : index
    %c0_125 = arith.constant 0 : index
    %c0_126 = arith.constant 0 : index
    %133 = vector.load %arg2[%c0_123, %c7_124, %c0_125, %c0_126] : memref<1x8x4x16xf32, #tpu.memory_space<vmem>>, vector<1x1x4x16xf32>
    %134 = vector.shape_cast %133 : vector<1x1x4x16xf32> to vector<4x16xf32>
    %cst_127 = arith.constant dense<0.000000e+00> : vector<2x16xf32>
    %135 = tpu.matmul %6, %134, %cst_127 {dimension_numbers = #tpu.dot_dimension_numbers<[1], [0], [0], [1], [0, 0, 1, 1], [], []>} : vector<2x4xf32>, vector<4x16xf32>, vector<2x16xf32> -> vector<2x16xf32>
    %cst_128 = arith.constant dense<0.000000e+00> : vector<2x16xf32>
    %136 = tpu.matmul %8, %134, %cst_128 {dimension_numbers = #tpu.dot_dimension_numbers<[1], [0], [0], [1], [0, 0, 1, 1], [], []>} : vector<2x4xf32>, vector<4x16xf32>, vector<2x16xf32> -> vector<2x16xf32>
    %cst_129 = arith.constant dense<0.000000e+00> : vector<2x16xf32>
    %137 = tpu.matmul %10, %134, %cst_129 {dimension_numbers = #tpu.dot_dimension_numbers<[1], [0], [0], [1], [0, 0, 1, 1], [], []>} : vector<2x4xf32>, vector<4x16xf32>, vector<2x16xf32> -> vector<2x16xf32>
    %cst_130 = arith.constant dense<0.000000e+00> : vector<2x16xf32>
    %138 = tpu.matmul %12, %134, %cst_130 {dimension_numbers = #tpu.dot_dimension_numbers<[1], [0], [0], [1], [0, 0, 1, 1], [], []>} : vector<2x4xf32>, vector<4x16xf32>, vector<2x16xf32> -> vector<2x16xf32>
    %139 = arith.select %17, %135, %136 : vector<2x16xi1>, vector<2x16xf32>
    %140 = arith.addf %139, %20 : vector<2x16xf32>
    %141 = arith.select %17, %137, %138 : vector<2x16xi1>, vector<2x16xf32>
    %142 = arith.addf %141, %20 : vector<2x16xf32>
    %c0_131 = arith.constant 0 : index
    %c2_132 = arith.constant 2 : index
    %c14 = arith.constant 14 : index
    %c0_133 = arith.constant 0 : index
    %143 = vector.load %arg6[%c0_131, %c2_132, %c14, %c0_133] : memref<1x4x16x16xf32, #tpu.memory_space<vmem>>, vector<1x2x1x16xf32>
    %144 = vector.shape_cast %143 : vector<1x2x1x16xf32> to vector<2x16xf32>
    %145 = vector.shape_cast %140 : vector<2x16xf32> to vector<1x2x1x16xf32>
    tpu.vector_store %arg6[%c0_131, %c2_132, %c14, %c0_133], %145 {strides = array<i32>} : memref<1x4x16x16xf32, #tpu.memory_space<vmem>>, vector<1x2x1x16xf32>,
    %c0_134 = arith.constant 0 : index
    %c2_135 = arith.constant 2 : index
    %c15 = arith.constant 15 : index
    %c0_136 = arith.constant 0 : index
    %146 = vector.load %arg6[%c0_134, %c2_135, %c15, %c0_136] : memref<1x4x16x16xf32, #tpu.memory_space<vmem>>, vector<1x2x1x16xf32>
    %147 = vector.shape_cast %146 : vector<1x2x1x16xf32> to vector<2x16xf32>
    %148 = vector.shape_cast %142 : vector<2x16xf32> to vector<1x2x1x16xf32>
    tpu.vector_store %arg6[%c0_134, %c2_135, %c15, %c0_136], %148 {strides = array<i32>} : memref<1x4x16x16xf32, #tpu.memory_space<vmem>>, vector<1x2x1x16xf32>,
    return
  }
  func.func @transform_0(%arg0: i32, %arg1: i32) -> (i32, i32, i32, i32) {
    %c0_i32 = arith.constant 0 : i32
    %c0_i32_0 = arith.constant 0 : i32
    %c0_i32_1 = arith.constant 0 : i32
    return %arg0, %arg1, %c0_i32, %c0_i32_0 : i32, i32, i32, i32
  }
  func.func @transform_1(%arg0: i32, %arg1: i32) -> (i32, i32, i32, i32) {
    %c0_i32 = arith.constant 0 : i32
    %c0_i32_0 = arith.constant 0 : i32
    %c0_i32_1 = arith.constant 0 : i32
    return %arg0, %c0_i32, %arg1, %c0_i32_0 : i32, i32, i32, i32
  }
  func.func @transform_2(%arg0: i32, %arg1: i32) -> (i32, i32, i32, i32) {
    %c0_i32 = arith.constant 0 : i32
    %c0_i32_0 = arith.constant 0 : i32
    %c0_i32_1 = arith.constant 0 : i32
    %c0_i32_2 = arith.constant 0 : i32
    %c0_i32_3 = arith.constant 0 : i32
    return %c0_i32, %c0_i32_0, %c0_i32_1, %c0_i32_2 : i32, i32, i32, i32
  }
  func.func @transform_3(%arg0: i32, %arg1: i32) -> (i32, i32) {
    %c0_i32 = arith.constant 0 : i32
    %c0_i32_0 = arith.constant 0 : i32
    %c0_i32_1 = arith.constant 0 : i32
    return %c0_i32, %c0_i32_0 : i32, i32
  }
  func.func @transform_4(%arg0: i32, %arg1: i32) -> (i32, i32, i32, i32) {
    %c0_i32 = arith.constant 0 : i32
    %c0_i32_0 = arith.constant 0 : i32
    %c0_i32_1 = arith.constant 0 : i32
    return %arg0, %c0_i32, %arg1, %c0_i32_0 : i32, i32, i32, i32
  }
}

</mosaic_0001>

<llo_original>
// kernel: tpu_custom_call.1
$region0: #{tpu_custom_call.1}
  #allocation0 [shape = 'u32[]', space=smem, size = 0x4, offset = 0x4, fixed_abs, tag = 'smem constant byte address 0x4 - core index']
  #allocation1 [shape = 'u32[72,128]{1,0:T(1,128)}', space=vmem, size = 0x9000, scoped, tag = 'internal scratch']
  %s0 = inlined_call_operand.hbm [shape: f32[2,8,4,16], index: 0, kind: input, shape index: {}]
  %s1 = inlined_call_operand.hbm [shape: f32[2,2,16,16], index: 1, kind: input, shape index: {}]
  %s2 = inlined_call_operand.hbm [shape: f32[2,2,2,4], index: 2, kind: input, shape index: {}]
  %s3 = inlined_call_operand.vmem [shape: f32[2,1], index: 3, kind: input, shape index: {}]
  %s4 = inlined_call_operand.hbm [shape: f32[2,4,16,16], index: 4, kind: output, shape index: {}]
  %s5 = sld [smem:[#allocation0]]
  $region61: #{tpu_custom_call.1} parent=0
    _
  %s7 = ssub.s32 1, %s5
  %s8 = scalar_select 0, %s7, %s5
  $region1: #{tpu_custom_call.1} parent=0
    #allocation2 [shape = 'u8[32768]{0}', space=vmem, size = 0x8000, scoped, tag = 'input window, operand 0']
    #allocation3 [shape = 's32[2]{0}', space=sflag, size = 0x8, scoped, tag = 'scoped memory for tpu_custom_call.1']
    #allocation4 [shape = 's32[2]{0}', space=sflag, size = 0x8, scoped, tag = 'scoped memory for tpu_custom_call.1']
    #allocation5 [shape = 'u8[32768]{0}', space=vmem, size = 0x8000, scoped, tag = 'input window, operand 1']
    #allocation6 [shape = 's32[2]{0}', space=sflag, size = 0x8, scoped, tag = 'scoped memory for tpu_custom_call.1']
    #allocation7 [shape = 'u8[4096]{0}', space=vmem, size = 0x1000, scoped, tag = 'input window, operand 2, single buffered']
    #allocation8 [shape = 'u8[65536]{0}', space=vmem, size = 0x10000, scoped, tag = 'output window, operand 0']
    %9 = vsyncpa [#allocation3], 0
    %s10 = scalar_lea.sflag [#allocation3], 1
    %11 = vsyncpa %s10, 0
    %12 = vsyncpa [#allocation6], 0
    %s13 = scalar_lea.sflag [#allocation6], 1
    %14 = vsyncpa %s13, 0
    %15 = vsyncpa [#allocation4], 0
    %s16 = scalar_lea.sflag [#allocation4], 1
    %17 = vsyncpa %s16, 0
    loop: start=0, step=1, limit=4
    $region2: #{tpu_custom_call.1} parent=1 // loop_pre_header
      _
    $region3: #{tpu_custom_call.1} parent=1 // loop_header
      %s19 = sphi 0, %s23
      %p20 = scmp.ge.s32.totalorder %s19, 4
      %s26 = sphi 0, %s38
      %s27 = sphi 0, %s34
      %s28 = sphi 0, %s26
      %s29 = sphi 0, %s27
      %s30 = sphi 0, %s28
      %s31 = sphi 0, %s29
      %s43 = sphi 0, %s45
      %s46 = sphi 0, %s43
      %s47 = sphi 0, %s46
      %s63 = sphi 0, %s47
      %s71 = sphi 0, %s73
      %s74 = sphi 0, %s71
      %s75 = sphi 0, %s74
      %s91 = sphi 0, %s75
      %s95 = sphi 0, %s95
      %s97 = sphi 0, %s95
      %s98 = sphi 0, %s97
      %s112 = sphi 0, %s98
      %s116 = sphi 0, %s116
      %s118 = sphi 0, %s116
      %s119 = sphi 0, %s118
      %s133 = sphi 0, %s119
      %s141 = sphi 0, %s143
      %s144 = sphi 0, %s141
      %s145 = sphi 0, %s144
      %s161 = sphi 0, %s145
    $region4: #{tpu_custom_call.1} parent=1 // loop_header_branch
      %22 = sbr.rel (%p20) target = $region8
    $region5: #{tpu_custom_call.1} parent=1 // loop_body
      %s24 = ssub.s32 %s19, 1
      %s25 = ssub.s32 %s19, 2
      %s32 = sadd.s32 1, %s27
      %p33 = scmp.ge.s32.totalorder %s32, 1
      %s34 = scalar_select %p33, 0, %s32
      %s35 = sadd.s32 1, %s26
      %s36 = scalar_select %p33, %s35, %s26
      %p37 = scmp.ge.s32.totalorder %s36, 2
      %s38 = scalar_select %p37, 0, %s36
      %s39 = ssub.s32 %s26, %s38
      %s40 = ssub.s32 %s27, %s34
      %s41 = sor.u32 %s39, %s40
      %p42 = scmp.eq.s32.totalorder %s41, 0
      %s44 = sadd.s32 %s43, 1
      %s45 = scalar_select %p42, %s43, %s44
      %p48 = pneg %p42
      %p49 = scmp.eq.s32.totalorder %s19, 1
      %p50 = por %p48, %p49
      %p51 = scmp.ne.s32.totalorder %s43, %s46
      %p52 = scmp.eq.s32.totalorder %s19, 0
      %p53 = por %p51, %p52
      %p54 = scmp.ne.s32.totalorder %s43, %s46
      %p55 = scmp.eq.s32.totalorder %s24, 1
      %p56 = por %p54, %p55
      %p57 = scmp.ne.s32.totalorder %s46, %s47
      %p58 = scmp.eq.s32.totalorder %s24, 0
      %p59 = por %p57, %p58
      %p60 = scmp.ne.s32.totalorder %s46, %s47
      %p61 = scmp.eq.s32.totalorder %s25, 1
      %p62 = por %p60, %p61
      %p64 = scmp.ne.s32.totalorder %s47, %s63
      %p65 = scmp.eq.s32.totalorder %s25, 0
      %p66 = por %p64, %p65
      %s67 = ssub.s32 %s26, %s38
      %s68 = ssub.s32 %s27, %s34
      %s69 = sor.u32 %s67, %s68
      %p70 = scmp.eq.s32.totalorder %s69, 0
      %s72 = sadd.s32 %s71, 1
      %s73 = scalar_select %p70, %s71, %s72
      %p76 = pneg %p70
      %p77 = scmp.eq.s32.totalorder %s19, 1
      %p78 = por %p76, %p77
      %p79 = scmp.ne.s32.totalorder %s71, %s74
      %p80 = scmp.eq.s32.totalorder %s19, 0
      %p81 = por %p79, %p80
      %p82 = scmp.ne.s32.totalorder %s71, %s74
      %p83 = scmp.eq.s32.totalorder %s24, 1
      %p84 = por %p82, %p83
      %p85 = scmp.ne.s32.totalorder %s74, %s75
      %p86 = scmp.eq.s32.totalorder %s24, 0
      %p87 = por %p85, %p86
      %p88 = scmp.ne.s32.totalorder %s74, %s75
      %p89 = scmp.eq.s32.totalorder %s25, 1
      %p90 = por %p88, %p89
      %p92 = scmp.ne.s32.totalorder %s75, %s91
      %p93 = scmp.eq.s32.totalorder %s25, 0
      %p94 = por %p92, %p93
      %s96 = sadd.s32 %s95, 1
      %p99 = scmp.eq.s32.totalorder %s19, 1
      %p100 = scmp.ne.s32.totalorder %s95, %s97
      %p101 = scmp.eq.s32.totalorder %s19, 0
      %p102 = por %p100, %p101
      %p103 = scmp.ne.s32.totalorder %s95, %s97
      %p104 = scmp.eq.s32.totalorder %s24, 1
      %p105 = por %p103, %p104
      %p106 = scmp.ne.s32.totalorder %s97, %s98
      %p107 = scmp.eq.s32.totalorder %s24, 0
      %p108 = por %p106, %p107
      %p109 = scmp.ne.s32.totalorder %s97, %s98
      %p110 = scmp.eq.s32.totalorder %s25, 1
      %p111 = por %p109, %p110
      %p113 = scmp.ne.s32.totalorder %s98, %s112
      %p114 = scmp.eq.s32.totalorder %s25, 0
      %p115 = por %p113, %p114
      %s117 = sadd.s32 %s116, 1
      %p120 = scmp.eq.s32.totalorder %s19, 1
      %p121 = scmp.ne.s32.totalorder %s116, %s118
      %p122 = scmp.eq.s32.totalorder %s19, 0
      %p123 = por %p121, %p122
      %p124 = scmp.ne.s32.totalorder %s116, %s118
      %p125 = scmp.eq.s32.totalorder %s24, 1
      %p126 = por %p124, %p125
      %p127 = scmp.ne.s32.totalorder %s118, %s119
      %p128 = scmp.eq.s32.totalorder %s24, 0
      %p129 = por %p127, %p128
      %p130 = scmp.ne.s32.totalorder %s118, %s119
      %p131 = scmp.eq.s32.totalorder %s25, 1
      %p132 = por %p130, %p131
      %p134 = scmp.ne.s32.totalorder %s119, %s133
      %p135 = scmp.eq.s32.totalorder %s25, 0
      %p136 = por %p134, %p135
      %s137 = ssub.s32 %s26, %s38
      %s138 = ssub.s32 %s27, %s34
      %s139 = sor.u32 %s137, %s138
      %p140 = scmp.eq.s32.totalorder %s139, 0
      %s142 = sadd.s32 %s141, 1
      %s143 = scalar_select %p140, %s141, %s142
      %p146 = pneg %p140
      %p147 = scmp.eq.s32.totalorder %s19, 1
      %p148 = por %p146, %p147
      %p149 = scmp.ne.s32.totalorder %s141, %s144
      %p150 = scmp.eq.s32.totalorder %s19, 0
      %p151 = por %p149, %p150
      %p152 = scmp.ne.s32.totalorder %s141, %s144
      %p153 = scmp.eq.s32.totalorder %s24, 1
      %p154 = por %p152, %p153
      %p155 = scmp.ne.s32.totalorder %s144, %s145
      %p156 = scmp.eq.s32.totalorder %s24, 0
      %p157 = por %p155, %p156
      %p158 = scmp.ne.s32.totalorder %s144, %s145
      %p159 = scmp.eq.s32.totalorder %s25, 1
      %p160 = por %p158, %p159
      %p162 = scmp.ne.s32.totalorder %s145, %s161
      %p163 = scmp.eq.s32.totalorder %s25, 0
      %p164 = por %p162, %p163
      %p165 = scmp.le.s32.totalorder 1, %s19
      %p166 = scmp.lt.s32.totalorder %s19, 3
      %p167 = pnand %p165, %p166
      %p168 = pneg %p167
      // Predicated region
      $region9: #{tpu_custom_call.1} parent=5 // pred_check
        _
      $region10: #{tpu_custom_call.1} parent=5 // pred_check_branch
        %170 = sbr.rel (%p167) target = $region12
      $region11: #{tpu_custom_call.1} parent=5 // pred_region
        %s171 = ssub.s32 %s19, 1
        // Predicated region
        $region13: #{tpu_custom_call.1} parent=11 // pred_check
          %p172 = pneg %p108
        $region14: #{tpu_custom_call.1} parent=11 // pred_check_branch
          %174 = sbr.rel (%p172) target = $region16
        $region15: #{tpu_custom_call.1} parent=11 // pred_region
          %176 = vsyncadd [#allocation6], 0
          %s177 = sshll.u32 %s2, 4
          %s178 = int_to_ptr.hbm [resolvable:$true] %s177
          %s179 = sshll.u32 [#allocation7], 4
          %s180 = int_to_ptr.vmem [resolvable:$true] %s179
          %185 = dma.hbm_to_vmem [thread:$0]  %s178, 128, %s180, [#allocation6], 32, 32, 2
        $region16: #{tpu_custom_call.1} parent=11 // pred_fallthru
          _
        // Predicated region
        $region17: #{tpu_custom_call.1} parent=11 // pred_check
          %p186 = pneg %p129
        $region18: #{tpu_custom_call.1} parent=11 // pred_check_branch
          %188 = sbr.rel (%p186) target = $region20
        $region19: #{tpu_custom_call.1} parent=11 // pred_region
          _
        $region20: #{tpu_custom_call.1} parent=11 // pred_fallthru
          _
      $region12: #{tpu_custom_call.1} parent=5 // pred_fallthru
        _
      %p189 = scmp.lt.s32.totalorder %s19, 2
      // Predicated region
      $region21: #{tpu_custom_call.1} parent=5 // pred_check
        %p190 = pneg %p189
      $region22: #{tpu_custom_call.1} parent=5 // pred_check_branch
        %192 = sbr.rel (%p190) target = $region24
      $region23: #{tpu_custom_call.1} parent=5 // pred_region
        // Predicated region
        $region25: #{tpu_custom_call.1} parent=23 // pred_check
          %p193 = pneg %p53
        $region26: #{tpu_custom_call.1} parent=23 // pred_check_branch
          %195 = sbr.rel (%p193) target = $region28
        $region27: #{tpu_custom_call.1} parent=23 // pred_region
          %s196 = sand.u32 %s43, 1
          %s197 = scalar_lea.sflag [#allocation3], %s196
          %s198 = sand.u32 %s43, 1
          %s199 = smul.addr %s198, 32
          %s200 = scalar_lea.vmem [#allocation2], %s199
          %s201 = smul.u32 8, %s27
          %203 = vsyncadd %s197, 0
          %s204 = smul.addr %s26, 8
          %s205 = sadd.s32 %s201, %s204
          %s206 = smul.addr %s205, 4
          %s207 = scalar_lea.hbm %s0, %s206
          %s208 = sshll.u32 %s207, 4
          %s209 = int_to_ptr.hbm [resolvable:$true] %s208
          %s210 = sshll.u32 %s200, 4
          %s211 = int_to_ptr.vmem [resolvable:$true] %s210
          %216 = dma.hbm_to_vmem [thread:$0]  %s209, 512, %s211, %s197, 64, 64, 4
        $region28: #{tpu_custom_call.1} parent=23 // pred_fallthru
          _
        // Predicated region
        $region29: #{tpu_custom_call.1} parent=23 // pred_check
          %p217 = pneg %p81
        $region30: #{tpu_custom_call.1} parent=23 // pred_check_branch
          %219 = sbr.rel (%p217) target = $region32
        $region31: #{tpu_custom_call.1} parent=23 // pred_region
          %s220 = sand.u32 %s19, 1
          %s221 = scalar_lea.sflag [#allocation6], %s220
          %s222 = sand.u32 %s71, 1
          %s223 = smul.addr %s222, 32
          %s224 = scalar_lea.vmem [#allocation5], %s223
          %s225 = smul.u32 2, %s27
          %227 = vsyncadd %s221, 0
          %s228 = smul.addr %s26, 4
          %s229 = sadd.s32 %s225, %s228
          %s230 = smul.addr %s229, 8
          %s231 = scalar_lea.hbm %s1, %s230
          %s232 = sshll.u32 %s231, 4
          %s233 = int_to_ptr.hbm [resolvable:$true] %s232
          %s234 = sshll.u32 %s224, 4
          %s235 = int_to_ptr.vmem [resolvable:$true] %s234
          %240 = dma.hbm_to_vmem [thread:$0]  %s233, 512, %s235, %s221, 128, 128, 8
        $region32: #{tpu_custom_call.1} parent=23 // pred_fallthru
          _
      $region24: #{tpu_custom_call.1} parent=5 // pred_fallthru
        _
      %p241 = scmp.le.s32.totalorder 1, %s19
      %p242 = scmp.lt.s32.totalorder %s19, 3
      %p243 = pnand %p241, %p242
      %p244 = pneg %p243
      // Predicated region
      $region33: #{tpu_custom_call.1} parent=5 // pred_check
        _
      $region34: #{tpu_custom_call.1} parent=5 // pred_check_branch
        %246 = sbr.rel (%p243) target = $region36
      $region35: #{tpu_custom_call.1} parent=5 // pred_region
        %s247 = ssub.s32 %s19, 1
        %s248 = sand.u32 %s46, 1
        %s249 = scalar_lea.sflag [#allocation3], %s248
        %s250 = sand.u32 %s46, 1
        %s251 = smul.addr %s250, 32
        %s252 = scalar_lea.vmem [#allocation2], %s251
        // Predicated region
        $region37: #{tpu_custom_call.1} parent=35 // pred_check
          %p253 = pneg %p59
        $region38: #{tpu_custom_call.1} parent=35 // pred_check_branch
          %255 = sbr.rel (%p253) target = $region40
        $region39: #{tpu_custom_call.1} parent=35 // pred_region
          %257 = dma.done %s249, 512
        $region40: #{tpu_custom_call.1} parent=35 // pred_fallthru
          _
        %s258 = sand.u32 %s24, 1
        %s259 = scalar_lea.sflag [#allocation6], %s258
        %s260 = sand.u32 %s74, 1
        %s261 = smul.addr %s260, 32
        %s262 = scalar_lea.vmem [#allocation5], %s261
        // Predicated region
        $region41: #{tpu_custom_call.1} parent=35 // pred_check
          %p263 = pneg %p87
        $region42: #{tpu_custom_call.1} parent=35 // pred_check_branch
          %265 = sbr.rel (%p263) target = $region44
        $region43: #{tpu_custom_call.1} parent=35 // pred_region
          %267 = dma.done %s259, 512
        $region44: #{tpu_custom_call.1} parent=35 // pred_fallthru
          _
        // Predicated region
        $region45: #{tpu_custom_call.1} parent=35 // pred_check
          %p268 = pneg %p108
        $region46: #{tpu_custom_call.1} parent=35 // pred_check_branch
          %270 = sbr.rel (%p268) target = $region48
        $region47: #{tpu_custom_call.1} parent=35 // pred_region
          %272 = dma.done [#allocation6], 128
        $region48: #{tpu_custom_call.1} parent=35 // pred_fallthru
          _
        %s273 = sand.u32 %s46, 1
        %s274 = scalar_lea.sflag [#allocation3], %s273
        %s275 = sand.u32 %s46, 1
        %s276 = smul.addr %s275, 32
        %s277 = scalar_lea.vmem [#allocation2], %s276
        %p278 = pneg %p59
        %p279 = pneg %p56
        %s280 = sand.u32 %s24, 1
        %s281 = scalar_lea.sflag [#allocation6], %s280
        %s282 = sand.u32 %s74, 1
        %s283 = smul.addr %s282, 32
        %s284 = scalar_lea.vmem [#allocation5], %s283
        %p285 = pneg %p87
        %p286 = pneg %p84
        %p287 = pneg %p108
        %p288 = pneg %p105
        %p289 = pneg %p129
        %p290 = pneg %p126
        %p291 = pneg %p157
        %p292 = pneg %p154
        %s293 = sand.u32 %s144, 1
        %s294 = scalar_lea.sflag [#allocation4], %s293
        %s295 = sand.u32 %s144, 1
        %s296 = smul.addr %s295, 64
        %s297 = scalar_lea.vmem [#allocation8], %s296
        %s298 = smul.u32 8, %s29
        %s299 = smul.u32 2, %s29
        %s300 = smul.u32 2, %s29
        %v301 = vld [vmem:[%s262] sm:$0xff]
        %v302 = vld [vmem:[%s262 + $0x8] sm:$0xff]
        %v303 = vld [vmem:[%s262 + $0x10] sm:$0xff]
        %v304 = vld [vmem:[%s262 + $0x18] sm:$0xff]
        %vm305 = vcmask 130048
        %306 = vst.msk [vmem:[%s297] sm:$0xff] %vm305, %v301
        %307 = vst.msk [vmem:[%s297 + $0x8] sm:$0xff] %vm305, %v302
        %308 = vst.msk [vmem:[%s297 + $0x10] sm:$0xff] %vm305, %v303
        %309 = vst.msk [vmem:[%s297 + $0x18] sm:$0xff] %vm305, %v304
        %v310 = vld [vmem:[#allocation7] sm:$0x3]
        %s311 = scalar_lea.vmem [#allocation7], 2
        %v312 = vld [vmem:[%s311] sm:$0x3]
        %s313 = scalar_lea.vmem [#allocation7], 4
        %v314 = vld [vmem:[%s313] sm:$0x3]
        %s315 = scalar_lea.vmem [#allocation7], 6
        %v316 = vld [vmem:[%s315] sm:$0x3]
        %v317 = vlaneseq
        %v318 = vand.u32 %v317, 127
        %v319 = vand.u32 %v318, 1
        %vm320 = vcmp.eq.s32.totalorder %v319, 0
        %v321 = vld [vmem:[%s3] sm:$0x3]
        %323 = vset.pattern.permute.xlu0 0
        %324 = vperm.xlu0 %323, %v321
        %v325 = vpop.permute.xlu0 %324
        %v327 = vld [vmem:[%s252] sm:$0xf]
        %vm328 = vcmask 31744
        %v330 = vsel %vm328, %v310, 0
        %vm332 = vcmask 1043456
        %v334 = vsel %vm332, %v327, 0
        %336 = vmatpush.msra.mxu0 0.0
        %337 = vmatpush.msra.mxu0 0.0
        %338 = vmatpush.msra.mxu0 0.0
        %339 = vmatpush.msra.mxu0 0.0
        %340 = vmatpush.msra.mxu0 0.0
        %341 = vmatpush.msra.mxu0 0.0
        %342 = vmatpush.msra.mxu0 0.0
        %343 = vmatpush.msra.mxu0 0.0
        %344 = vmatpush.msra.mxu0 0.0
        %345 = vmatpush.msra.mxu0 0.0
        %346 = vmatpush.msra.mxu0 0.0
        %347 = vmatpush.msra.mxu0 0.0
        %348 = vmatpush.msra.mxu0 0.0
        %349 = vmatpush.msra.mxu0 0.0
        %350 = vmatpush.msra.mxu0 0.0
        %351 = vmatpush.msra.mxu0 %v334
        %352 = vmatmul.f32.gmra.mxu0 %v330
        %v353 = vpop.f32.mrf.mxu0
        %v354 = vadd.f32 0.0, %v353
        %355 = vdwg.mxu0
        %v357 = vsel %vm328, %v312, 0
        %359 = vmatpush.msra.mxu0 0.0
        %360 = vmatpush.msra.mxu0 0.0
        %361 = vmatpush.msra.mxu0 0.0
        %362 = vmatpush.msra.mxu0 0.0
        %363 = vmatpush.msra.mxu0 0.0
        %364 = vmatpush.msra.mxu0 0.0
        %365 = vmatpush.msra.mxu0 0.0
        %366 = vmatpush.msra.mxu0 0.0
        %367 = vmatpush.msra.mxu0 0.0
        %368 = vmatpush.msra.mxu0 0.0
        %369 = vmatpush.msra.mxu0 0.0
        %370 = vmatpush.msra.mxu0 0.0
        %371 = vmatpush.msra.mxu0 0.0
        %372 = vmatpush.msra.mxu0 0.0
        %373 = vmatpush.msra.mxu0 0.0
        %374 = vmatpush.msra.mxu0 %v334
        %375 = vmatmul.f32.gmra.mxu0 %v357
        %v376 = vpop.f32.mrf.mxu0
        %v377 = vadd.f32 0.0, %v376
        %378 = vdwg.mxu0
        %v380 = vsel %vm328, %v314, 0
        %382 = vmatpush.msra.mxu0 0.0
        %383 = vmatpush.msra.mxu0 0.0
        %384 = vmatpush.msra.mxu0 0.0
        %385 = vmatpush.msra.mxu0 0.0
        %386 = vmatpush.msra.mxu0 0.0
        %387 = vmatpush.msra.mxu0 0.0
        %388 = vmatpush.msra.mxu0 0.0
        %389 = vmatpush.msra.mxu0 0.0
        %390 = vmatpush.msra.mxu0 0.0
        %391 = vmatpush.msra.mxu0 0.0
        %392 = vmatpush.msra.mxu0 0.0
        %393 = vmatpush.msra.mxu0 0.0
        %394 = vmatpush.msra.mxu0 0.0
        %395 = vmatpush.msra.mxu0 0.0
        %396 = vmatpush.msra.mxu0 0.0
        %397 = vmatpush.msra.mxu0 %v334
        %398 = vmatmul.f32.gmra.mxu0 %v380
        %v399 = vpop.f32.mrf.mxu0
        %v400 = vadd.f32 0.0, %v399
        %401 = vdwg.mxu0
        %v403 = vsel %vm328, %v316, 0
        %405 = vmatpush.msra.mxu0 0.0
        %406 = vmatpush.msra.mxu0 0.0
        %407 = vmatpush.msra.mxu0 0.0
        %408 = vmatpush.msra.mxu0 0.0
        %409 = vmatpush.msra.mxu0 0.0
        %410 = vmatpush.msra.mxu0 0.0
        %411 = vmatpush.msra.mxu0 0.0
        %412 = vmatpush.msra.mxu0 0.0
        %413 = vmatpush.msra.mxu0 0.0
        %414 = vmatpush.msra.mxu0 0.0
        %415 = vmatpush.msra.mxu0 0.0
        %416 = vmatpush.msra.mxu0 0.0
        %417 = vmatpush.msra.mxu0 0.0
        %418 = vmatpush.msra.mxu0 0.0
        %419 = vmatpush.msra.mxu0 0.0
        %420 = vmatpush.msra.mxu0 %v334
        %421 = vmatmul.f32.gmra.mxu0 %v403
        %v422 = vpop.f32.mrf.mxu0
        %v423 = vadd.f32 0.0, %v422
        %424 = vdwg.mxu0
        %v425 = vsel %vm320, %v354, %v377
        %v426 = vadd.f32 %v425, %v325
        %v427 = vsel %vm320, %v400, %v423
        %v428 = vadd.f32 %v427, %v325
        %v430 = vrot.slane %v426, 1
        %s432 = scalar_lea.vmem %s297, 32 [#allocation8]
        %vm433 = vcmask 122880
        %434 = vst.msk [vmem:[%s432] sm:$0x1] %vm433, %v426
        %435 = vst.msk [vmem:[%s432 + $0x10] sm:$0x1] %vm433, %v430
        %v437 = vrot.slane %v428, 1
        %439 = vst.msk [vmem:[%s432 + $0x1] sm:$0x1] %vm433, %v428
        %440 = vst.msk [vmem:[%s432 + $0x11] sm:$0x1] %vm433, %v437
        %s441 = scalar_lea.vmem %s252, 4 [#allocation2]
        %v442 = vld [vmem:[%s441] sm:$0xf]
        %v444 = vsel %vm332, %v442, 0
        %446 = vmatpush.msra.mxu0 0.0
        %447 = vmatpush.msra.mxu0 0.0
        %448 = vmatpush.msra.mxu0 0.0
        %449 = vmatpush.msra.mxu0 0.0
        %450 = vmatpush.msra.mxu0 0.0
        %451 = vmatpush.msra.mxu0 0.0
        %452 = vmatpush.msra.mxu0 0.0
        %453 = vmatpush.msra.mxu0 0.0
        %454 = vmatpush.msra.mxu0 0.0
        %455 = vmatpush.msra.mxu0 0.0
        %456 = vmatpush.msra.mxu0 0.0
        %457 = vmatpush.msra.mxu0 0.0
        %458 = vmatpush.msra.mxu0 0.0
        %459 = vmatpush.msra.mxu0 0.0
        %460 = vmatpush.msra.mxu0 0.0
        %461 = vmatpush.msra.mxu0 %v444
        %462 = vmatmul.f32.gmra.mxu0 %v330
        %v463 = vpop.f32.mrf.mxu0
        %v464 = vadd.f32 0.0, %v463
        %465 = vdwg.mxu0
        %466 = vmatpush.msra.mxu0 0.0
        %467 = vmatpush.msra.mxu0 0.0
        %468 = vmatpush.msra.mxu0 0.0
        %469 = vmatpush.msra.mxu0 0.0
        %470 = vmatpush.msra.mxu0 0.0
        %471 = vmatpush.msra.mxu0 0.0
        %472 = vmatpush.msra.mxu0 0.0
        %473 = vmatpush.msra.mxu0 0.0
        %474 = vmatpush.msra.mxu0 0.0
        %475 = vmatpush.msra.mxu0 0.0
        %476 = vmatpush.msra.mxu0 0.0
        %477 = vmatpush.msra.mxu0 0.0
        %478 = vmatpush.msra.mxu0 0.0
        %479 = vmatpush.msra.mxu0 0.0
        %480 = vmatpush.msra.mxu0 0.0
        %481 = vmatpush.msra.mxu0 %v444
        %482 = vmatmul.f32.gmra.mxu0 %v357
        %v483 = vpop.f32.mrf.mxu0
        %v484 = vadd.f32 0.0, %v483
        %485 = vdwg.mxu0
        %486 = vmatpush.msra.mxu0 0.0
        %487 = vmatpush.msra.mxu0 0.0
        %488 = vmatpush.msra.mxu0 0.0
        %489 = vmatpush.msra.mxu0 0.0
        %490 = vmatpush.msra.mxu0 0.0
        %491 = vmatpush.msra.mxu0 0.0
        %492 = vmatpush.msra.mxu0 0.0
        %493 = vmatpush.msra.mxu0 0.0
        %494 = vmatpush.msra.mxu0 0.0
        %495 = vmatpush.msra.mxu0 0.0
        %496 = vmatpush.msra.mxu0 0.0
        %497 = vmatpush.msra.mxu0 0.0
        %498 = vmatpush.msra.mxu0 0.0
        %499 = vmatpush.msra.mxu0 0.0
        %500 = vmatpush.msra.mxu0 0.0
        %501 = vmatpush.msra.mxu0 %v444
        %502 = vmatmul.f32.gmra.mxu0 %v380
        %v503 = vpop.f32.mrf.mxu0
        %v504 = vadd.f32 0.0, %v503
        %505 = vdwg.mxu0
        %506 = vmatpush.msra.mxu0 0.0
        %507 = vmatpush.msra.mxu0 0.0
        %508 = vmatpush.msra.mxu0 0.0
        %509 = vmatpush.msra.mxu0 0.0
        %510 = vmatpush.msra.mxu0 0.0
        %511 = vmatpush.msra.mxu0 0.0
        %512 = vmatpush.msra.mxu0 0.0
        %513 = vmatpush.msra.mxu0 0.0
        %514 = vmatpush.msra.mxu0 0.0
        %515 = vmatpush.msra.mxu0 0.0
        %516 = vmatpush.msra.mxu0 0.0
        %517 = vmatpush.msra.mxu0 0.0
        %518 = vmatpush.msra.mxu0 0.0
        %519 = vmatpush.msra.mxu0 0.0
        %520 = vmatpush.msra.mxu0 0.0
        %521 = vmatpush.msra.mxu0 %v444
        %522 = vmatmul.f32.gmra.mxu0 %v403
        %v523 = vpop.f32.mrf.mxu0
        %v524 = vadd.f32 0.0, %v523
        %525 = vdwg.mxu0
        %v526 = vsel %vm320, %v464, %v484
        %v527 = vadd.f32 %v526, %v325
        %v528 = vsel %vm320, %v504, %v524
        %v529 = vadd.f32 %v528, %v325
        %v531 = vrot.slane %v527, 1
        %533 = vst.msk [vmem:[%s432 + $0x2] sm:$0x1] %vm433, %v527
        %534 = vst.msk [vmem:[%s432 + $0x12] sm:$0x1] %vm433, %v531
        %v536 = vrot.slane %v529, 1
        %538 = vst.msk [vmem:[%s432 + $0x3] sm:$0x1] %vm433, %v529
        %539 = vst.msk [vmem:[%s432 + $0x13] sm:$0x1] %vm433, %v536
        %s540 = scalar_lea.vmem %s252, 8 [#allocation2]
        %v541 = vld [vmem:[%s540] sm:$0xf]
        %v543 = vsel %vm332, %v541, 0
        %545 = vmatpush.msra.mxu0 0.0
        %546 = vmatpush.msra.mxu0 0.0
        %547 = vmatpush.msra.mxu0 0.0
        %548 = vmatpush.msra.mxu0 0.0
        %549 = vmatpush.msra.mxu0 0.0
        %550 = vmatpush.msra.mxu0 0.0
        %551 = vmatpush.msra.mxu0 0.0
        %552 = vmatpush.msra.mxu0 0.0
        %553 = vmatpush.msra.mxu0 0.0
        %554 = vmatpush.msra.mxu0 0.0
        %555 = vmatpush.msra.mxu0 0.0
        %556 = vmatpush.msra.mxu0 0.0
        %557 = vmatpush.msra.mxu0 0.0
        %558 = vmatpush.msra.mxu0 0.0
        %559 = vmatpush.msra.mxu0 0.0
        %560 = vmatpush.msra.mxu0 %v543
        %561 = vmatmul.f32.gmra.mxu0 %v330
        %v562 = vpop.f32.mrf.mxu0
        %v563 = vadd.f32 0.0, %v562
        %564 = vdwg.mxu0
        %565 = vmatpush.msra.mxu0 0.0
        %566 = vmatpush.msra.mxu0 0.0
        %567 = vmatpush.msra.mxu0 0.0
        %568 = vmatpush.msra.mxu0 0.0
        %569 = vmatpush.msra.mxu0 0.0
        %570 = vmatpush.msra.mxu0 0.0
        %571 = vmatpush.msra.mxu0 0.0
        %572 = vmatpush.msra.mxu0 0.0
        %573 = vmatpush.msra.mxu0 0.0
        %574 = vmatpush.msra.mxu0 0.0
        %575 = vmatpush.msra.mxu0 0.0
        %576 = vmatpush.msra.mxu0 0.0
        %577 = vmatpush.msra.mxu0 0.0
        %578 = vmatpush.msra.mxu0 0.0
        %579 = vmatpush.msra.mxu0 0.0
        %580 = vmatpush.msra.mxu0 %v543
        %581 = vmatmul.f32.gmra.mxu0 %v357
        %v582 = vpop.f32.mrf.mxu0
        %v583 = vadd.f32 0.0, %v582
        %584 = vdwg.mxu0
        %585 = vmatpush.msra.mxu0 0.0
        %586 = vmatpush.msra.mxu0 0.0
        %587 = vmatpush.msra.mxu0 0.0
        %588 = vmatpush.msra.mxu0 0.0
        %589 = vmatpush.msra.mxu0 0.0
        %590 = vmatpush.msra.mxu0 0.0
        %591 = vmatpush.msra.mxu0 0.0
        %592 = vmatpush.msra.mxu0 0.0
        %593 = vmatpush.msra.mxu0 0.0
        %594 = vmatpush.msra.mxu0 0.0
        %595 = vmatpush.msra.mxu0 0.0
        %596 = vmatpush.msra.mxu0 0.0
        %597 = vmatpush.msra.mxu0 0.0
        %598 = vmatpush.msra.mxu0 0.0
        %599 = vmatpush.msra.mxu0 0.0
        %600 = vmatpush.msra.mxu0 %v543
        %601 = vmatmul.f32.gmra.mxu0 %v380
        %v602 = vpop.f32.mrf.mxu0
        %v603 = vadd.f32 0.0, %v602
        %604 = vdwg.mxu0
        %605 = vmatpush.msra.mxu0 0.0
        %606 = vmatpush.msra.mxu0 0.0
        %607 = vmatpush.msra.mxu0 0.0
        %608 = vmatpush.msra.mxu0 0.0
        %609 = vmatpush.msra.mxu0 0.0
        %610 = vmatpush.msra.mxu0 0.0
        %611 = vmatpush.msra.mxu0 0.0
        %612 = vmatpush.msra.mxu0 0.0
        %613 = vmatpush.msra.mxu0 0.0
        %614 = vmatpush.msra.mxu0 0.0
        %615 = vmatpush.msra.mxu0 0.0
        %616 = vmatpush.msra.mxu0 0.0
        %617 = vmatpush.msra.mxu0 0.0
        %618 = vmatpush.msra.mxu0 0.0
        %619 = vmatpush.msra.mxu0 0.0
        %620 = vmatpush.msra.mxu0 %v543
        %621 = vmatmul.f32.gmra.mxu0 %v403
        %v622 = vpop.f32.mrf.mxu0
        %v623 = vadd.f32 0.0, %v622
        %624 = vdwg.mxu0
        %v625 = vsel %vm320, %v563, %v583
        %v626 = vadd.f32 %v625, %v325
        %v627 = vsel %vm320, %v603, %v623
        %v628 = vadd.f32 %v627, %v325
        %v630 = vrot.slane %v626, 1
        %632 = vst.msk [vmem:[%s432 + $0x4] sm:$0x1] %vm433, %v626
        %633 = vst.msk [vmem:[%s432 + $0x14] sm:$0x1] %vm433, %v630
        %v635 = vrot.slane %v628, 1
        %637 = vst.msk [vmem:[%s432 + $0x5] sm:$0x1] %vm433, %v628
        %638 = vst.msk [vmem:[%s432 + $0x15] sm:$0x1] %vm433, %v635
        %s639 = scalar_lea.vmem %s252, 12 [#allocation2]
        %v640 = vld [vmem:[%s639] sm:$0xf]
        %v642 = vsel %vm332, %v640, 0
        %644 = vmatpush.msra.mxu0 0.0
        %645 = vmatpush.msra.mxu0 0.0
        %646 = vmatpush.msra.mxu0 0.0
        %647 = vmatpush.msra.mxu0 0.0
        %648 = vmatpush.msra.mxu0 0.0
        %649 = vmatpush.msra.mxu0 0.0
        %650 = vmatpush.msra.mxu0 0.0
        %651 = vmatpush.msra.mxu0 0.0
        %652 = vmatpush.msra.mxu0 0.0
        %653 = vmatpush.msra.mxu0 0.0
        %654 = vmatpush.msra.mxu0 0.0
        %655 = vmatpush.msra.mxu0 0.0
        %656 = vmatpush.msra.mxu0 0.0
        %657 = vmatpush.msra.mxu0 0.0
        %658 = vmatpush.msra.mxu0 0.0
        %659 = vmatpush.msra.mxu0 %v642
        %660 = vmatmul.f32.gmra.mxu0 %v330
        %v661 = vpop.f32.mrf.mxu0
        %v662 = vadd.f32 0.0, %v661
        %663 = vdwg.mxu0
        %664 = vmatpush.msra.mxu0 0.0
        %665 = vmatpush.msra.mxu0 0.0
        %666 = vmatpush.msra.mxu0 0.0
        %667 = vmatpush.msra.mxu0 0.0
        %668 = vmatpush.msra.mxu0 0.0
        %669 = vmatpush.msra.mxu0 0.0
        %670 = vmatpush.msra.mxu0 0.0
        %671 = vmatpush.msra.mxu0 0.0
        %672 = vmatpush.msra.mxu0 0.0
        %673 = vmatpush.msra.mxu0 0.0
        %674 = vmatpush.msra.mxu0 0.0
        %675 = vmatpush.msra.mxu0 0.0
        %676 = vmatpush.msra.mxu0 0.0
        %677 = vmatpush.msra.mxu0 0.0
        %678 = vmatpush.msra.mxu0 0.0
        %679 = vmatpush.msra.mxu0 %v642
        %680 = vmatmul.f32.gmra.mxu0 %v357
        %v681 = vpop.f32.mrf.mxu0
        %v682 = vadd.f32 0.0, %v681
        %683 = vdwg.mxu0
        %684 = vmatpush.msra.mxu0 0.0
        %685 = vmatpush.msra.mxu0 0.0
        %686 = vmatpush.msra.mxu0 0.0
        %687 = vmatpush.msra.mxu0 0.0
        %688 = vmatpush.msra.mxu0 0.0
        %689 = vmatpush.msra.mxu0 0.0
        %690 = vmatpush.msra.mxu0 0.0
        %691 = vmatpush.msra.mxu0 0.0
        %692 = vmatpush.msra.mxu0 0.0
        %693 = vmatpush.msra.mxu0 0.0
        %694 = vmatpush.msra.mxu0 0.0
        %695 = vmatpush.msra.mxu0 0.0
        %696 = vmatpush.msra.mxu0 0.0
        %697 = vmatpush.msra.mxu0 0.0
        %698 = vmatpush.msra.mxu0 0.0
        %699 = vmatpush.msra.mxu0 %v642
        %700 = vmatmul.f32.gmra.mxu0 %v380
        %v701 = vpop.f32.mrf.mxu0
        %v702 = vadd.f32 0.0, %v701
        %703 = vdwg.mxu0
        %704 = vmatpush.msra.mxu0 0.0
        %705 = vmatpush.msra.mxu0 0.0
        %706 = vmatpush.msra.mxu0 0.0
        %707 = vmatpush.msra.mxu0 0.0
        %708 = vmatpush.msra.mxu0 0.0
        %709 = vmatpush.msra.mxu0 0.0
        %710 = vmatpush.msra.mxu0 0.0
        %711 = vmatpush.msra.mxu0 0.0
        %712 = vmatpush.msra.mxu0 0.0
        %713 = vmatpush.msra.mxu0 0.0
        %714 = vmatpush.msra.mxu0 0.0
        %715 = vmatpush.msra.mxu0 0.0
        %716 = vmatpush.msra.mxu0 0.0
        %717 = vmatpush.msra.mxu0 0.0
        %718 = vmatpush.msra.mxu0 0.0
        %719 = vmatpush.msra.mxu0 %v642
        %720 = vmatmul.f32.gmra.mxu0 %v403
        %v721 = vpop.f32.mrf.mxu0
        %v722 = vadd.f32 0.0, %v721
        %723 = vdwg.mxu0
        %v724 = vsel %vm320, %v662, %v682
        %v725 = vadd.f32 %v724, %v325
        %v726 = vsel %vm320, %v702, %v722
        %v727 = vadd.f32 %v726, %v325
        %v729 = vrot.slane %v725, 1
        %731 = vst.msk [vmem:[%s432 + $0x6] sm:$0x1] %vm433, %v725
        %732 = vst.msk [vmem:[%s432 + $0x16] sm:$0x1] %vm433, %v729
        %v734 = vrot.slane %v727, 1
        %736 = vst.msk [vmem:[%s432 + $0x7] sm:$0x1] %vm433, %v727
        %737 = vst.msk [vmem:[%s432 + $0x17] sm:$0x1] %vm433, %v734
        %s738 = scalar_lea.vmem %s252, 16 [#allocation2]
        %v739 = vld [vmem:[%s738] sm:$0xf]
        %v741 = vsel %vm332, %v739, 0
        %743 = vmatpush.msra.mxu0 0.0
        %744 = vmatpush.msra.mxu0 0.0
        %745 = vmatpush.msra.mxu0 0.0
        %746 = vmatpush.msra.mxu0 0.0
        %747 = vmatpush.msra.mxu0 0.0
        %748 = vmatpush.msra.mxu0 0.0
        %749 = vmatpush.msra.mxu0 0.0
        %750 = vmatpush.msra.mxu0 0.0
        %751 = vmatpush.msra.mxu0 0.0
        %752 = vmatpush.msra.mxu0 0.0
        %753 = vmatpush.msra.mxu0 0.0
        %754 = vmatpush.msra.mxu0 0.0
        %755 = vmatpush.msra.mxu0 0.0
        %756 = vmatpush.msra.mxu0 0.0
        %757 = vmatpush.msra.mxu0 0.0
        %758 = vmatpush.msra.mxu0 %v741
        %759 = vmatmul.f32.gmra.mxu0 %v330
        %v760 = vpop.f32.mrf.mxu0
        %v761 = vadd.f32 0.0, %v760
        %762 = vdwg.mxu0
        %763 = vmatpush.msra.mxu0 0.0
        %764 = vmatpush.msra.mxu0 0.0
        %765 = vmatpush.msra.mxu0 0.0
        %766 = vmatpush.msra.mxu0 0.0
        %767 = vmatpush.msra.mxu0 0.0
        %768 = vmatpush.msra.mxu0 0.0
        %769 = vmatpush.msra.mxu0 0.0
        %770 = vmatpush.msra.mxu0 0.0
        %771 = vmatpush.msra.mxu0 0.0
        %772 = vmatpush.msra.mxu0 0.0
        %773 = vmatpush.msra.mxu0 0.0
        %774 = vmatpush.msra.mxu0 0.0
        %775 = vmatpush.msra.mxu0 0.0
        %776 = vmatpush.msra.mxu0 0.0
        %777 = vmatpush.msra.mxu0 0.0
        %778 = vmatpush.msra.mxu0 %v741
        %779 = vmatmul.f32.gmra.mxu0 %v357
        %v780 = vpop.f32.mrf.mxu0
        %v781 = vadd.f32 0.0, %v780
        %782 = vdwg.mxu0
        %783 = vmatpush.msra.mxu0 0.0
        %784 = vmatpush.msra.mxu0 0.0
        %785 = vmatpush.msra.mxu0 0.0
        %786 = vmatpush.msra.mxu0 0.0
        %787 = vmatpush.msra.mxu0 0.0
        %788 = vmatpush.msra.mxu0 0.0
        %789 = vmatpush.msra.mxu0 0.0
        %790 = vmatpush.msra.mxu0 0.0
        %791 = vmatpush.msra.mxu0 0.0
        %792 = vmatpush.msra.mxu0 0.0
        %793 = vmatpush.msra.mxu0 0.0
        %794 = vmatpush.msra.mxu0 0.0
        %795 = vmatpush.msra.mxu0 0.0
        %796 = vmatpush.msra.mxu0 0.0
        %797 = vmatpush.msra.mxu0 0.0
        %798 = vmatpush.msra.mxu0 %v741
        %799 = vmatmul.f32.gmra.mxu0 %v380
        %v800 = vpop.f32.mrf.mxu0
        %v801 = vadd.f32 0.0, %v800
        %802 = vdwg.mxu0
        %803 = vmatpush.msra.mxu0 0.0
        %804 = vmatpush.msra.mxu0 0.0
        %805 = vmatpush.msra.mxu0 0.0
        %806 = vmatpush.msra.mxu0 0.0
        %807 = vmatpush.msra.mxu0 0.0
        %808 = vmatpush.msra.mxu0 0.0
        %809 = vmatpush.msra.mxu0 0.0
        %810 = vmatpush.msra.mxu0 0.0
        %811 = vmatpush.msra.mxu0 0.0
        %812 = vmatpush.msra.mxu0 0.0
        %813 = vmatpush.msra.mxu0 0.0
        %814 = vmatpush.msra.mxu0 0.0
        %815 = vmatpush.msra.mxu0 0.0
        %816 = vmatpush.msra.mxu0 0.0
        %817 = vmatpush.msra.mxu0 0.0
        %818 = vmatpush.msra.mxu0 %v741
        %819 = vmatmul.f32.gmra.mxu0 %v403
        %v820 = vpop.f32.mrf.mxu0
        %v821 = vadd.f32 0.0, %v820
        %822 = vdwg.mxu0
        %v823 = vsel %vm320, %v761, %v781
        %v824 = vadd.f32 %v823, %v325
        %v825 = vsel %vm320, %v801, %v821
        %v826 = vadd.f32 %v825, %v325
        %v828 = vrot.slane %v824, 1
        %830 = vst.msk [vmem:[%s432 + $0x8] sm:$0x1] %vm433, %v824
        %831 = vst.msk [vmem:[%s432 + $0x18] sm:$0x1] %vm433, %v828
        %v833 = vrot.slane %v826, 1
        %835 = vst.msk [vmem:[%s432 + $0x9] sm:$0x1] %vm433, %v826
        %836 = vst.msk [vmem:[%s432 + $0x19] sm:$0x1] %vm433, %v833
        %s837 = scalar_lea.vmem %s252, 20 [#allocation2]
        %v838 = vld [vmem:[%s837] sm:$0xf]
        %v840 = vsel %vm332, %v838, 0
        %842 = vmatpush.msra.mxu0 0.0
        %843 = vmatpush.msra.mxu0 0.0
        %844 = vmatpush.msra.mxu0 0.0
        %845 = vmatpush.msra.mxu0 0.0
        %846 = vmatpush.msra.mxu0 0.0
        %847 = vmatpush.msra.mxu0 0.0
        %848 = vmatpush.msra.mxu0 0.0
        %849 = vmatpush.msra.mxu0 0.0
        %850 = vmatpush.msra.mxu0 0.0
        %851 = vmatpush.msra.mxu0 0.0
        %852 = vmatpush.msra.mxu0 0.0
        %853 = vmatpush.msra.mxu0 0.0
        %854 = vmatpush.msra.mxu0 0.0
        %855 = vmatpush.msra.mxu0 0.0
        %856 = vmatpush.msra.mxu0 0.0
        %857 = vmatpush.msra.mxu0 %v840
        %858 = vmatmul.f32.gmra.mxu0 %v330
        %v859 = vpop.f32.mrf.mxu0
        %v860 = vadd.f32 0.0, %v859
        %861 = vdwg.mxu0
        %862 = vmatpush.msra.mxu0 0.0
        %863 = vmatpush.msra.mxu0 0.0
        %864 = vmatpush.msra.mxu0 0.0
        %865 = vmatpush.msra.mxu0 0.0
        %866 = vmatpush.msra.mxu0 0.0
        %867 = vmatpush.msra.mxu0 0.0
        %868 = vmatpush.msra.mxu0 0.0
        %869 = vmatpush.msra.mxu0 0.0
        %870 = vmatpush.msra.mxu0 0.0
        %871 = vmatpush.msra.mxu0 0.0
        %872 = vmatpush.msra.mxu0 0.0
        %873 = vmatpush.msra.mxu0 0.0
        %874 = vmatpush.msra.mxu0 0.0
        %875 = vmatpush.msra.mxu0 0.0
        %876 = vmatpush.msra.mxu0 0.0
        %877 = vmatpush.msra.mxu0 %v840
        %878 = vmatmul.f32.gmra.mxu0 %v357
        %v879 = vpop.f32.mrf.mxu0
        %v880 = vadd.f32 0.0, %v879
        %881 = vdwg.mxu0
        %882 = vmatpush.msra.mxu0 0.0
        %883 = vmatpush.msra.mxu0 0.0
        %884 = vmatpush.msra.mxu0 0.0
        %885 = vmatpush.msra.mxu0 0.0
        %886 = vmatpush.msra.mxu0 0.0
        %887 = vmatpush.msra.mxu0 0.0
        %888 = vmatpush.msra.mxu0 0.0
        %889 = vmatpush.msra.mxu0 0.0
        %890 = vmatpush.msra.mxu0 0.0
        %891 = vmatpush.msra.mxu0 0.0
        %892 = vmatpush.msra.mxu0 0.0
        %893 = vmatpush.msra.mxu0 0.0
        %894 = vmatpush.msra.mxu0 0.0
        %895 = vmatpush.msra.mxu0 0.0
        %896 = vmatpush.msra.mxu0 0.0
        %897 = vmatpush.msra.mxu0 %v840
        %898 = vmatmul.f32.gmra.mxu0 %v380
        %v899 = vpop.f32.mrf.mxu0
        %v900 = vadd.f32 0.0, %v899
        %901 = vdwg.mxu0
        %902 = vmatpush.msra.mxu0 0.0
        %903 = vmatpush.msra.mxu0 0.0
        %904 = vmatpush.msra.mxu0 0.0
        %905 = vmatpush.msra.mxu0 0.0
        %906 = vmatpush.msra.mxu0 0.0
        %907 = vmatpush.msra.mxu0 0.0
        %908 = vmatpush.msra.mxu0 0.0
        %909 = vmatpush.msra.mxu0 0.0
        %910 = vmatpush.msra.mxu0 0.0
        %911 = vmatpush.msra.mxu0 0.0
        %912 = vmatpush.msra.mxu0 0.0
        %913 = vmatpush.msra.mxu0 0.0
        %914 = vmatpush.msra.mxu0 0.0
        %915 = vmatpush.msra.mxu0 0.0
        %916 = vmatpush.msra.mxu0 0.0
        %917 = vmatpush.msra.mxu0 %v840
        %918 = vmatmul.f32.gmra.mxu0 %v403
        %v919 = vpop.f32.mrf.mxu0
        %v920 = vadd.f32 0.0, %v919
        %921 = vdwg.mxu0
        %v922 = vsel %vm320, %v860, %v880
        %v923 = vadd.f32 %v922, %v325
        %v924 = vsel %vm320, %v900, %v920
        %v925 = vadd.f32 %v924, %v325
        %v927 = vrot.slane %v923, 1
        %929 = vst.msk [vmem:[%s432 + $0xa] sm:$0x1] %vm433, %v923
        %930 = vst.msk [vmem:[%s432 + $0x1a] sm:$0x1] %vm433, %v927
        %v932 = vrot.slane %v925, 1
        %934 = vst.msk [vmem:[%s432 + $0xb] sm:$0x1] %vm433, %v925
        %935 = vst.msk [vmem:[%s432 + $0x1b] sm:$0x1] %vm433, %v932
        %s936 = scalar_lea.vmem %s252, 24 [#allocation2]
        %v937 = vld [vmem:[%s936] sm:$0xf]
        %v939 = vsel %vm332, %v937, 0
        %941 = vmatpush.msra.mxu0 0.0
        %942 = vmatpush.msra.mxu0 0.0
        %943 = vmatpush.msra.mxu0 0.0
        %944 = vmatpush.msra.mxu0 0.0
        %945 = vmatpush.msra.mxu0 0.0
        %946 = vmatpush.msra.mxu0 0.0
        %947 = vmatpush.msra.mxu0 0.0
        %948 = vmatpush.msra.mxu0 0.0
        %949 = vmatpush.msra.mxu0 0.0
        %950 = vmatpush.msra.mxu0 0.0
        %951 = vmatpush.msra.mxu0 0.0
        %952 = vmatpush.msra.mxu0 0.0
        %953 = vmatpush.msra.mxu0 0.0
        %954 = vmatpush.msra.mxu0 0.0
        %955 = vmatpush.msra.mxu0 0.0
        %956 = vmatpush.msra.mxu0 %v939
        %957 = vmatmul.f32.gmra.mxu0 %v330
        %v958 = vpop.f32.mrf.mxu0
        %v959 = vadd.f32 0.0, %v958
        %960 = vdwg.mxu0
        %961 = vmatpush.msra.mxu0 0.0
        %962 = vmatpush.msra.mxu0 0.0
        %963 = vmatpush.msra.mxu0 0.0
        %964 = vmatpush.msra.mxu0 0.0
        %965 = vmatpush.msra.mxu0 0.0
        %966 = vmatpush.msra.mxu0 0.0
        %967 = vmatpush.msra.mxu0 0.0
        %968 = vmatpush.msra.mxu0 0.0
        %969 = vmatpush.msra.mxu0 0.0
        %970 = vmatpush.msra.mxu0 0.0
        %971 = vmatpush.msra.mxu0 0.0
        %972 = vmatpush.msra.mxu0 0.0
        %973 = vmatpush.msra.mxu0 0.0
        %974 = vmatpush.msra.mxu0 0.0
        %975 = vmatpush.msra.mxu0 0.0
        %976 = vmatpush.msra.mxu0 %v939
        %977 = vmatmul.f32.gmra.mxu0 %v357
        %v978 = vpop.f32.mrf.mxu0
        %v979 = vadd.f32 0.0, %v978
        %980 = vdwg.mxu0
        %981 = vmatpush.msra.mxu0 0.0
        %982 = vmatpush.msra.mxu0 0.0
        %983 = vmatpush.msra.mxu0 0.0
        %984 = vmatpush.msra.mxu0 0.0
        %985 = vmatpush.msra.mxu0 0.0
        %986 = vmatpush.msra.mxu0 0.0
        %987 = vmatpush.msra.mxu0 0.0
        %988 = vmatpush.msra.mxu0 0.0
        %989 = vmatpush.msra.mxu0 0.0
        %990 = vmatpush.msra.mxu0 0.0
        %991 = vmatpush.msra.mxu0 0.0
        %992 = vmatpush.msra.mxu0 0.0
        %993 = vmatpush.msra.mxu0 0.0
        %994 = vmatpush.msra.mxu0 0.0
        %995 = vmatpush.msra.mxu0 0.0
        %996 = vmatpush.msra.mxu0 %v939
        %997 = vmatmul.f32.gmra.mxu0 %v380
        %v998 = vpop.f32.mrf.mxu0
        %v999 = vadd.f32 0.0, %v998
        %1000 = vdwg.mxu0
        %1001 = vmatpush.msra.mxu0 0.0
        %1002 = vmatpush.msra.mxu0 0.0
        %1003 = vmatpush.msra.mxu0 0.0
        %1004 = vmatpush.msra.mxu0 0.0
        %1005 = vmatpush.msra.mxu0 0.0
        %1006 = vmatpush.msra.mxu0 0.0
        %1007 = vmatpush.msra.mxu0 0.0
        %1008 = vmatpush.msra.mxu0 0.0
        %1009 = vmatpush.msra.mxu0 0.0
        %1010 = vmatpush.msra.mxu0 0.0
        %1011 = vmatpush.msra.mxu0 0.0
        %1012 = vmatpush.msra.mxu0 0.0
        %1013 = vmatpush.msra.mxu0 0.0
        %1014 = vmatpush.msra.mxu0 0.0
        %1015 = vmatpush.msra.mxu0 0.0
        %1016 = vmatpush.msra.mxu0 %v939
        %1017 = vmatmul.f32.gmra.mxu0 %v403
        %v1018 = vpop.f32.mrf.mxu0
        %v1019 = vadd.f32 0.0, %v1018
        %1020 = vdwg.mxu0
        %v1021 = vsel %vm320, %v959, %v979
        %v1022 = vadd.f32 %v1021, %v325
        %v1023 = vsel %vm320, %v999, %v1019
        %v1024 = vadd.f32 %v1023, %v325
        %v1026 = vrot.slane %v1022, 1
        %1028 = vst.msk [vmem:[%s432 + $0xc] sm:$0x1] %vm433, %v1022
        %1029 = vst.msk [vmem:[%s432 + $0x1c] sm:$0x1] %vm433, %v1026
        %v1031 = vrot.slane %v1024, 1
        %1033 = vst.msk [vmem:[%s432 + $0xd] sm:$0x1] %vm433, %v1024
        %1034 = vst.msk [vmem:[%s432 + $0x1d] sm:$0x1] %vm433, %v1031
        %s1035 = scalar_lea.vmem %s252, 28 [#allocation2]
        %v1036 = vld [vmem:[%s1035] sm:$0xf]
        %v1038 = vsel %vm332, %v1036, 0
        %1040 = vmatpush.msra.mxu0 0.0
        %1041 = vmatpush.msra.mxu0 0.0
        %1042 = vmatpush.msra.mxu0 0.0
        %1043 = vmatpush.msra.mxu0 0.0
        %1044 = vmatpush.msra.mxu0 0.0
        %1045 = vmatpush.msra.mxu0 0.0
        %1046 = vmatpush.msra.mxu0 0.0
        %1047 = vmatpush.msra.mxu0 0.0
        %1048 = vmatpush.msra.mxu0 0.0
        %1049 = vmatpush.msra.mxu0 0.0
        %1050 = vmatpush.msra.mxu0 0.0
        %1051 = vmatpush.msra.mxu0 0.0
        %1052 = vmatpush.msra.mxu0 0.0
        %1053 = vmatpush.msra.mxu0 0.0
        %1054 = vmatpush.msra.mxu0 0.0
        %1055 = vmatpush.msra.mxu0 %v1038
        %1056 = vmatmul.f32.gmra.mxu0 %v330
        %v1057 = vpop.f32.mrf.mxu0
        %v1058 = vadd.f32 0.0, %v1057
        %1059 = vdwg.mxu0
        %1060 = vmatpush.msra.mxu0 0.0
        %1061 = vmatpush.msra.mxu0 0.0
        %1062 = vmatpush.msra.mxu0 0.0
        %1063 = vmatpush.msra.mxu0 0.0
        %1064 = vmatpush.msra.mxu0 0.0
        %1065 = vmatpush.msra.mxu0 0.0
        %1066 = vmatpush.msra.mxu0 0.0
        %1067 = vmatpush.msra.mxu0 0.0
        %1068 = vmatpush.msra.mxu0 0.0
        %1069 = vmatpush.msra.mxu0 0.0
        %1070 = vmatpush.msra.mxu0 0.0
        %1071 = vmatpush.msra.mxu0 0.0
        %1072 = vmatpush.msra.mxu0 0.0
        %1073 = vmatpush.msra.mxu0 0.0
        %1074 = vmatpush.msra.mxu0 0.0
        %1075 = vmatpush.msra.mxu0 %v1038
        %1076 = vmatmul.f32.gmra.mxu0 %v357
        %v1077 = vpop.f32.mrf.mxu0
        %v1078 = vadd.f32 0.0, %v1077
        %1079 = vdwg.mxu0
        %1080 = vmatpush.msra.mxu0 0.0
        %1081 = vmatpush.msra.mxu0 0.0
        %1082 = vmatpush.msra.mxu0 0.0
        %1083 = vmatpush.msra.mxu0 0.0
        %1084 = vmatpush.msra.mxu0 0.0
        %1085 = vmatpush.msra.mxu0 0.0
        %1086 = vmatpush.msra.mxu0 0.0
        %1087 = vmatpush.msra.mxu0 0.0
        %1088 = vmatpush.msra.mxu0 0.0
        %1089 = vmatpush.msra.mxu0 0.0
        %1090 = vmatpush.msra.mxu0 0.0
        %1091 = vmatpush.msra.mxu0 0.0
        %1092 = vmatpush.msra.mxu0 0.0
        %1093 = vmatpush.msra.mxu0 0.0
        %1094 = vmatpush.msra.mxu0 0.0
        %1095 = vmatpush.msra.mxu0 %v1038
        %1096 = vmatmul.f32.gmra.mxu0 %v380
        %v1097 = vpop.f32.mrf.mxu0
        %v1098 = vadd.f32 0.0, %v1097
        %1099 = vdwg.mxu0
        %1100 = vmatpush.msra.mxu0 0.0
        %1101 = vmatpush.msra.mxu0 0.0
        %1102 = vmatpush.msra.mxu0 0.0
        %1103 = vmatpush.msra.mxu0 0.0
        %1104 = vmatpush.msra.mxu0 0.0
        %1105 = vmatpush.msra.mxu0 0.0
        %1106 = vmatpush.msra.mxu0 0.0
        %1107 = vmatpush.msra.mxu0 0.0
        %1108 = vmatpush.msra.mxu0 0.0
        %1109 = vmatpush.msra.mxu0 0.0
        %1110 = vmatpush.msra.mxu0 0.0
        %1111 = vmatpush.msra.mxu0 0.0
        %1112 = vmatpush.msra.mxu0 0.0
        %1113 = vmatpush.msra.mxu0 0.0
        %1114 = vmatpush.msra.mxu0 0.0
        %1115 = vmatpush.msra.mxu0 %v1038
        %1116 = vmatmul.f32.gmra.mxu0 %v403
        %v1117 = vpop.f32.mrf.mxu0
        %v1118 = vadd.f32 0.0, %v1117
        %1119 = vdwg.mxu0
        %v1120 = vsel %vm320, %v1058, %v1078
        %v1121 = vadd.f32 %v1120, %v325
        %v1122 = vsel %vm320, %v1098, %v1118
        %v1123 = vadd.f32 %v1122, %v325
        %v1125 = vrot.slane %v1121, 1
        %1127 = vst.msk [vmem:[%s432 + $0xe] sm:$0x1] %vm433, %v1121
        %1128 = vst.msk [vmem:[%s432 + $0x1e] sm:$0x1] %vm433, %v1125
        %v1130 = vrot.slane %v1123, 1
        %1132 = vst.msk [vmem:[%s432 + $0xf] sm:$0x1] %vm433, %v1123
        %1133 = vst.msk [vmem:[%s432 + $0x1f] sm:$0x1] %vm433, %v1130
        %s1134 = sand.u32 %s144, 1
        %s1135 = scalar_lea.sflag [#allocation4], %s1134
        %s1136 = sand.u32 %s144, 1
        %s1137 = smul.addr %s1136, 64
        %s1138 = scalar_lea.vmem [#allocation8], %s1137
        // Predicated region
        $region49: #{tpu_custom_call.1} parent=35 // pred_check
          %p1139 = pneg %p154
        $region50: #{tpu_custom_call.1} parent=35 // pred_check_branch
          %1141 = sbr.rel (%p1139) target = $region52
        $region51: #{tpu_custom_call.1} parent=35 // pred_region
          %s1142 = smul.u32 2, %s29
          %1144 = vsyncadd %s1135, 0
          %s1145 = smul.addr %s28, 8
          %s1146 = sadd.s32 %s1142, %s1145
          %s1147 = smul.addr %s1146, 8
          %s1148 = scalar_lea.hbm %s4, %s1147
          %s1149 = sshll.u32 %s1138, 4
          %s1150 = int_to_ptr.vmem [resolvable:$true] %s1149
          %s1151 = sshll.u32 %s1148, 4
          %s1152 = int_to_ptr.hbm [resolvable:$true] %s1151
          %1157 = dma.vmem_to_hbm [thread:$0]  %s1150, 1024, %s1152, %s1135, 128, 128, 8
        $region52: #{tpu_custom_call.1} parent=35 // pred_fallthru
          _
      $region36: #{tpu_custom_call.1} parent=5 // pred_fallthru
        _
      %p1158 = scmp.le.s32.totalorder 2, %s19
      // Predicated region
      $region53: #{tpu_custom_call.1} parent=5 // pred_check
        %p1159 = pneg %p1158
      $region54: #{tpu_custom_call.1} parent=5 // pred_check_branch
        %1161 = sbr.rel (%p1159) target = $region56
      $region55: #{tpu_custom_call.1} parent=5 // pred_region
        %s1162 = ssub.s32 %s19, 2
        // Predicated region
        $region57: #{tpu_custom_call.1} parent=55 // pred_check
          %p1163 = pneg %p160
        $region58: #{tpu_custom_call.1} parent=55 // pred_check_branch
          %1165 = sbr.rel (%p1163) target = $region60
        $region59: #{tpu_custom_call.1} parent=55 // pred_region
          %s1166 = sand.u32 %s145, 1
          %s1167 = scalar_lea.sflag [#allocation4], %s1166
          %s1168 = sand.u32 %s145, 1
          %s1169 = smul.addr %s1168, 64
          %s1170 = scalar_lea.vmem [#allocation8], %s1169
          %1172 = dma.done %s1167, 1024
        $region60: #{tpu_custom_call.1} parent=55 // pred_fallthru
          _
      $region56: #{tpu_custom_call.1} parent=5 // pred_fallthru
        _
    $region6: #{tpu_custom_call.1} parent=1 // loop_footer
      %s23 = sadd.s32 1, %s19
    $region7: #{tpu_custom_call.1} parent=1 // loop_footer_branch
      %18 = sbr.rel target = $region3
    $region8: #{tpu_custom_call.1} parent=1 // loop_exit
      _
    %1173 = vsyncpa [#allocation3], 1
    %s1174 = scalar_lea.sflag [#allocation3], 1
    %1175 = vsyncpa %s1174, 1
    %1176 = vsyncpa [#allocation6], 1
    %s1177 = scalar_lea.sflag [#allocation6], 1
    %1178 = vsyncpa %s1177, 1
    %1179 = vsyncpa [#allocation4], 1
    %s1180 = scalar_lea.sflag [#allocation4], 1
    %1181 = vsyncpa %s1180, 1

</llo_original>
